<compile_context>
chip_gen: v7x
topology: tpu7x:2x2x1
jax: 0.10.0
libtpu: 0.0.40
codegen_flags: <defaults>
</compile_context>

<pallas_src>
import jax
import jax.numpy as jnp
import numpy as np
from jax.experimental import pallas as pl
from jax.experimental.pallas import tpu as pltpu


# ----------------------------- Pallas kernel ------------------------------- #
def lstm_model_kernel(
    tb_ref,     # (2T, B_pad, G) f32 : rows [0:T) = precomputed layer-0 ih gates,
                #                      rows [T:2T) = 0/1 freeze mask
    w_ref,      # (2L, G, G)    bf16 : [W_hh^T (L) | W_ih^T layers 1..L-1 | fc_w^T],
                #                      each padded with zero rows D..G
    const_ref,  # (L+2, G)      f32  : [gate scale; gate shift; rest biases; fc bias]
    out_ref,    # (B_pad, G)    f32  : padded logits (lane- and sublane-dense store)
):
    two_t, Bp, G = tb_ref.shape
    T = two_t // 2
    n_layers = w_ref.shape[0] // 2
    D = G // 4

    # Hoisted broadcasts (broadcast_in_dim is not CSE'd inside the unrolled loop).
    scale = jnp.broadcast_to(const_ref[0:1, :], (Bp, G))   # 1 (i/f/o lanes), 2 (g lanes)
    shift = jnp.broadcast_to(const_ref[1:2, :], (Bp, G))   # 0 (i/f/o lanes), -1 (g lanes)
    bias_rest = [jnp.broadcast_to(const_ref[2 + i:3 + i, :], (Bp, G))
                 for i in range(n_layers - 1)]
    fc_b = const_ref[n_layers + 1:n_layers + 2, :]          # (1, G)

    # Weights stay VMEM/vreg resident across the statically unrolled time loop.
    w_hh = [w_ref[l] for l in range(n_layers)]
    w_ih = [w_ref[n_layers + l] for l in range(n_layers - 1)]
    fc_w = w_ref[2 * n_layers - 1]

    # Hidden / cell state carried as values; kept full (Bp, G) width so every
    # MXU feed and elementwise op works on whole vregs (lanes [0:D) are the
    # real state, the rest are bounded garbage multiplied by zero weight rows).
    h = [jnp.zeros((Bp, G), jnp.float32) for _ in range(n_layers)]
    c = [jnp.zeros((Bp, G), jnp.float32) for _ in range(n_layers)]

    def cell(pre, h_prev, c_prev, m):
        # One full-width sigmoid; g lanes recover tanh(g) = 2*sigmoid(2g) - 1
        # via the per-lane affine (weights/biases for g were pre-scaled by 2).
        act = jax.nn.sigmoid(pre) * scale + shift      # chunks: [i, f, tanh(g), o]
        f_al = pltpu.roll(act, 3 * D, 1)               # f       -> lanes [0:D)
        g_al = pltpu.roll(act, 2 * D, 1)               # tanh(g) -> lanes [0:D)
        o_al = pltpu.roll(act, 1 * D, 1)               # o       -> lanes [0:D)
        c_new = f_al * c_prev + act * g_al             # valid in lanes [0:D)
        h_new = o_al * jnp.tanh(c_new)                 # valid in lanes [0:D)
        # Freeze state for t >= lengths[b] (pack_padded_sequence semantics);
        # m is exactly 0.0 or 1.0.
        return h_prev + m * (h_new - h_prev), c_prev + m * (c_new - c_prev)

    # Statically unrolled time loop (T small/known).
    # TODO(synk): for T beyond ~32 switch to lax.fori_loop(..., unroll=4) and
    # index ih0/mask from a VMEM scratch per step to stay inside the vreg budget.
    for t in range(T):
        m = tb_ref[T + t]                              # (Bp, G) 0/1 float
        # Layer 0: only the recurrent matmul remains on the critical path.
        pre = jnp.dot(h[0].astype(jnp.bfloat16), w_hh[0],
                      preferred_element_type=jnp.float32) + tb_ref[t]
        h[0], c[0] = cell(pre, h[0], c[0], m)
        # Layers 1..L-1.
        for l in range(1, n_layers):
            pre = (jnp.dot(h[l - 1].astype(jnp.bfloat16), w_ih[l - 1],
                           preferred_element_type=jnp.float32)
                   + jnp.dot(h[l].astype(jnp.bfloat16), w_hh[l],
                             preferred_element_type=jnp.float32)
                   + bias_rest[l - 1])
            h[l], c[l] = cell(pre, h[l], c[l], m)

    # h[-1] is frozen at t = lengths[b]-1, i.e. lstm_out[b, lengths[b]-1, :].
    # (Bp, G) = (8, 128): full unmasked lane/sublane-dense store.
    out_ref[...] = jnp.dot(h[-1].astype(jnp.bfloat16), fc_w,
                           preferred_element_type=jnp.float32) + fc_b


# ------------------------------- Wrapper ------------------------------------ #
def lstm_model_forward(x, lengths, params):
    """LSTMModel.forward(x, lengths) as one gridless, VMEM-resident Pallas call."""
    B, T = x.shape
    L, G, D = params["wih"].shape            # G == 4*D
    n_out = params["fc_w"].shape[0]          # 7
    assert G == 4 * D and G % 128 == 0, "packing assumes 4*d_model multiple of 128"
    B_pad = max(8, ((B + 7) // 8) * 8)       # full sublanes for the recurrence/output
    hp = jax.lax.Precision.HIGHEST

    def scale_g(a):   # x2 on the g-gate chunk: enables tanh(g) = 2*sigmoid(2g) - 1
        return a.at[..., 2 * D:3 * D].multiply(2.0)

    # ---- parameter folding (once per call, off the recurrent critical path) --
    wih_t = jnp.transpose(params["wih"], (0, 2, 1))      # (L, D, G)
    whh_t = jnp.transpose(params["whh"], (0, 2, 1))      # (L, D, G)
    bias = params["bih"] + params["bhh"]                 # (L, G) pre-summed

    pw = params["proj_w"].reshape(1, D)                  # Linear(1, D) weight^T
    pb = params["proj_b"].reshape(1, D)
    # input_dim == 1: fold input_proj through layer-0 W_ih.
    w_eff = scale_g(jnp.dot(pw, wih_t[0], precision=hp))                    # (1, G)
    b_eff = scale_g(jnp.dot(pb, wih_t[0], precision=hp) + bias[0:1])        # (1, G)

    # Precompute layer-0 ih gates for every timestep + 0/1 freeze mask, pack
    # both into ONE lane-dense (2T, B_pad, G) input.
    x_tb = jnp.transpose(x)                                                  # (T, B)
    ih0 = x_tb[:, :, None] * w_eff[None] + b_eff[None]                       # (T, B, G)
    ih0 = jnp.pad(ih0, ((0, 0), (0, B_pad - B), (0, 0)))
    msk = (jnp.arange(T)[:, None] < lengths.astype(jnp.int32)[None, :]).astype(jnp.float32)
    msk = jnp.pad(msk, ((0, 0), (0, B_pad - B)))                             # (T, B_pad)
    msk = jnp.broadcast_to(msk[:, :, None], (T, B_pad, G))
    tb_pack = jnp.concatenate([ih0, msk], axis=0)                            # (2T, B_pad, G)

    # One stacked weight tensor, bf16 MXU operands, contracting dim padded D->G
    # with zero rows so the wide hidden state feeds the MXU without lane slices.
    def pad_rows(w):                                     # (D, G) -> (G, G)
        return jnp.pad(w, ((0, G - D), (0, 0)))
    w_blocks = [pad_rows(scale_g(whh_t[l])) for l in range(L)]
    w_blocks += [pad_rows(scale_g(wih_t[l])) for l in range(1, L)]
    fcw_pad = jnp.zeros((G, G), jnp.float32).at[:D, :n_out].set(params["fc_w"].T)
    w_blocks.append(fcw_pad)
    w_pack = jnp.stack(w_blocks).astype(jnp.bfloat16)    # (2L, G, G)

    # One constants tensor: gate affine, rest-layer biases, fc bias.
    gate_scale = jnp.ones((G,), jnp.float32).at[2 * D:3 * D].set(2.0)
    gate_shift = jnp.zeros((G,), jnp.float32).at[2 * D:3 * D].set(-1.0)
    rows = [gate_scale, gate_shift]
    rows += [scale_g(bias[l]) for l in range(1, L)]
    rows.append(jnp.zeros((G,), jnp.float32).at[:n_out].set(params["fc_b"]))
    const_pack = jnp.stack(rows)                         # (L+2, G)

    vmem = pl.BlockSpec(memory_space=pltpu.MemorySpace.VMEM)
    out_pad = pl.pallas_call(
        lstm_model_kernel,
        out_shape=jax.ShapeDtypeStruct((B_pad, G), jnp.float32),
        in_specs=[vmem, vmem, vmem],
        out_specs=vmem,
    )(tb_pack, w_pack, const_pack)
    return out_pad[:B, :n_out]


# ------------------------- Pure-JAX reference ------------------------------- #
def reference_forward(x, lengths, params):
    B, T = x.shape
    L, G, D = params["wih"].shape
    hp = jax.lax.Precision.HIGHEST
    pw = params["proj_w"][:, 0]                                          # (D,)
    xp = x[..., None] * pw[None, None, :] + params["proj_b"][None, None, :]
    h = jnp.zeros((L, B, D), jnp.float32)
    c = jnp.zeros((L, B, D), jnp.float32)
    for t in range(T):
        mask = (t < lengths)[:, None]
        inp = xp[:, t]
        hs, cs = [], []
        for l in range(L):
            gates = (
                jnp.dot(inp, params["wih"][l].T, precision=hp)
                + jnp.dot(h[l], params["whh"][l].T, precision=hp)
                + params["bih"][l]
                + params["bhh"][l]
            )
            i_g = jax.nn.sigmoid(gates[:, 0 * D:1 * D])
            f_g = jax.nn.sigmoid(gates[:, 1 * D:2 * D])
            g_g = jnp.tanh(gates[:, 2 * D:3 * D])
            o_g = jax.nn.sigmoid(gates[:, 3 * D:4 * D])
            c_new = f_g * c[l] + i_g * g_g
            h_new = o_g * jnp.tanh(c_new)
            hs.append(jnp.where(mask, h_new, h[l]))
            cs.append(jnp.where(mask, c_new, c[l]))
            inp = hs[-1]
        h = jnp.stack(hs)
        c = jnp.stack(cs)
    return jnp.dot(h[L - 1], params["fc_w"].T, precision=hp) + params["fc_b"][None, :]


# --------------------------------- Main -------------------------------------- #
if __name__ == "__main__":
    B, T = 2, 8          # batch, sequence length
    D = 32               # d_model
    L = 2                # num_layers
    OUT = 7              # fc output classes

    key = jax.random.PRNGKey(0)
    ks = jax.random.split(key, 10)
    s = 0.1

    params = {
        # input_proj: nn.Linear(1, D) -> weight (D, 1), bias (D,)
        "proj_w": (s * jax.random.normal(ks[0], (D, 1))).astype(jnp.float32),
        "proj_b": (s * jax.random.normal(ks[1], (D,))).astype(jnp.float32),
        # nn.LSTM per-layer weight_ih / weight_hh: (4D, D); biases: (4D,)
        "wih": (s * jax.random.normal(ks[2], (L, 4 * D, D))).astype(jnp.float32),
        "whh": (s * jax.random.normal(ks[3], (L, 4 * D, D))).astype(jnp.float32),
        "bih": (s * jax.random.normal(ks[4], (L, 4 * D))).astype(jnp.float32),
        "bhh": (s * jax.random.normal(ks[5], (L, 4 * D))).astype(jnp.float32),
        # fc: nn.Linear(D, 7) -> weight (7, D), bias (7,)
        "fc_w": (s * jax.random.normal(ks[6], (OUT, D))).astype(jnp.float32),
        "fc_b": (s * jax.random.normal(ks[7], (OUT,))).astype(jnp.float32),
    }

    x = jax.random.normal(ks[8], (B, T), dtype=jnp.float32)
    lengths = jnp.array([8, 5], dtype=jnp.int32)   # enforce_sorted=False -> order-free

    out = lstm_model_forward(x, lengths, params)
    out = jax.block_until_ready(out)

    ref = reference_forward(x, lengths, params)
    # bf16 MXU operands (per perf review) -> slightly looser tolerance than pure f32.
    np.testing.assert_allclose(np.asarray(out), np.asarray(ref), rtol=5e-3, atol=5e-3)
    assert out.shape == (B, OUT)

    print("KERNEL_OK")
</pallas_src>

<mosaic_0001>
module attributes {stable_mosaic.version = 11 : i64} {
  func.func @lstm_model_kernel(%arg0: memref<16x8x128xf32, #tpu.memory_space<vmem>>, %arg1: memref<4x128x128xbf16, #tpu.memory_space<vmem>>, %arg2: memref<4x128xf32, #tpu.memory_space<vmem>>, %arg3: memref<8x128xf32, #tpu.memory_space<vmem>>) attributes {dimension_semantics = [], scalar_prefetch = 0 : i64, scratch_operands = 0 : i64, tpu.core_type = #tpu.core_type<tc>} {
    %c0 = arith.constant 0 : index
    %c0_0 = arith.constant 0 : index
    %0 = vector.load %arg2[%c0, %c0_0] : memref<4x128xf32, #tpu.memory_space<vmem>>, vector<1x128xf32>
    %1 = vector.shape_cast %0 : vector<1x128xf32> to vector<1x128xf32>
    %2 = vector.broadcast %1 : vector<1x128xf32> to vector<8x128xf32>
    %c1 = arith.constant 1 : index
    %c0_1 = arith.constant 0 : index
    %3 = vector.load %arg2[%c1, %c0_1] : memref<4x128xf32, #tpu.memory_space<vmem>>, vector<1x128xf32>
    %4 = vector.shape_cast %3 : vector<1x128xf32> to vector<1x128xf32>
    %5 = vector.broadcast %4 : vector<1x128xf32> to vector<8x128xf32>
    %c2 = arith.constant 2 : index
    %c0_2 = arith.constant 0 : index
    %6 = vector.load %arg2[%c2, %c0_2] : memref<4x128xf32, #tpu.memory_space<vmem>>, vector<1x128xf32>
    %7 = vector.shape_cast %6 : vector<1x128xf32> to vector<1x128xf32>
    %8 = vector.broadcast %7 : vector<1x128xf32> to vector<8x128xf32>
    %c3 = arith.constant 3 : index
    %c0_3 = arith.constant 0 : index
    %9 = vector.load %arg2[%c3, %c0_3] : memref<4x128xf32, #tpu.memory_space<vmem>>, vector<1x128xf32>
    %c0_4 = arith.constant 0 : index
    %c0_5 = arith.constant 0 : index
    %c0_6 = arith.constant 0 : index
    %10 = vector.load %arg1[%c0_4, %c0_5, %c0_6] : memref<4x128x128xbf16, #tpu.memory_space<vmem>>, vector<1x128x128xbf16>
    %11 = vector.shape_cast %10 : vector<1x128x128xbf16> to vector<128x128xbf16>
    %c1_7 = arith.constant 1 : index
    %c0_8 = arith.constant 0 : index
    %c0_9 = arith.constant 0 : index
    %12 = vector.load %arg1[%c1_7, %c0_8, %c0_9] : memref<4x128x128xbf16, #tpu.memory_space<vmem>>, vector<1x128x128xbf16>
    %13 = vector.shape_cast %12 : vector<1x128x128xbf16> to vector<128x128xbf16>
    %c2_10 = arith.constant 2 : index
    %c0_11 = arith.constant 0 : index
    %c0_12 = arith.constant 0 : index
    %14 = vector.load %arg1[%c2_10, %c0_11, %c0_12] : memref<4x128x128xbf16, #tpu.memory_space<vmem>>, vector<1x128x128xbf16>
    %15 = vector.shape_cast %14 : vector<1x128x128xbf16> to vector<128x128xbf16>
    %c3_13 = arith.constant 3 : index
    %c0_14 = arith.constant 0 : index
    %c0_15 = arith.constant 0 : index
    %16 = vector.load %arg1[%c3_13, %c0_14, %c0_15] : memref<4x128x128xbf16, #tpu.memory_space<vmem>>, vector<1x128x128xbf16>
    %17 = vector.shape_cast %16 : vector<1x128x128xbf16> to vector<128x128xbf16>
    %cst = arith.constant 0.000000e+00 : f32
    %18 = vector.broadcast %cst : f32 to vector<8x128xf32>
    %cst_16 = arith.constant 0.000000e+00 : f32
    %19 = vector.broadcast %cst_16 : f32 to vector<8x128xf32>
    %cst_17 = arith.constant 0.000000e+00 : f32
    %20 = vector.broadcast %cst_17 : f32 to vector<8x128xf32>
    %cst_18 = arith.constant 0.000000e+00 : f32
    %21 = vector.broadcast %cst_18 : f32 to vector<8x128xf32>
    %c8 = arith.constant 8 : index
    %c0_19 = arith.constant 0 : index
    %c0_20 = arith.constant 0 : index
    %22 = vector.load %arg0[%c8, %c0_19, %c0_20] : memref<16x8x128xf32, #tpu.memory_space<vmem>>, vector<1x8x128xf32>
    %23 = vector.shape_cast %22 : vector<1x8x128xf32> to vector<8x128xf32>
    %24 = arith.truncf %18 : vector<8x128xf32> to vector<8x128xbf16>
    %cst_21 = arith.constant dense<0.000000e+00> : vector<8x128xf32>
    %25 = tpu.matmul %24, %11, %cst_21 {dimension_numbers = #tpu.dot_dimension_numbers<[1], [0], [0], [1], [0, 0, 1, 1], [], []>} : vector<8x128xbf16>, vector<128x128xbf16>, vector<8x128xf32> -> vector<8x128xf32>
    %c0_22 = arith.constant 0 : index
    %c0_23 = arith.constant 0 : index
    %c0_24 = arith.constant 0 : index
    %26 = vector.load %arg0[%c0_22, %c0_23, %c0_24] : memref<16x8x128xf32, #tpu.memory_space<vmem>>, vector<1x8x128xf32>
    %27 = vector.shape_cast %26 : vector<1x8x128xf32> to vector<8x128xf32>
    %28 = arith.addf %25, %27 : vector<8x128xf32>
    %29 = arith.negf %28 : vector<8x128xf32>
    %30 = math.exp %29 : vector<8x128xf32>
    %cst_25 = arith.constant 1.000000e+00 : f32
    %31 = vector.broadcast %cst_25 : f32 to vector<8x128xf32>
    %32 = arith.addf %31, %30 : vector<8x128xf32>
    %33 = arith.divf %31, %32 : vector<8x128xf32>
    %34 = arith.mulf %33, %2 : vector<8x128xf32>
    %35 = arith.addf %34, %5 : vector<8x128xf32>
    %c96_i32 = arith.constant 96 : i32
    %36 = tpu.dynamic_rotate %35 by %c96_i32 dim 1 : vector<8x128xf32>, i32 -> vector<8x128xf32>
    %c64_i32 = arith.constant 64 : i32
    %37 = tpu.dynamic_rotate %35 by %c64_i32 dim 1 : vector<8x128xf32>, i32 -> vector<8x128xf32>
    %c32_i32 = arith.constant 32 : i32
    %38 = tpu.dynamic_rotate %35 by %c32_i32 dim 1 : vector<8x128xf32>, i32 -> vector<8x128xf32>
    %39 = arith.mulf %36, %20 : vector<8x128xf32>
    %40 = arith.mulf %35, %37 : vector<8x128xf32>
    %41 = arith.addf %39, %40 : vector<8x128xf32>
    %42 = math.tanh %41 : vector<8x128xf32>
    %43 = arith.mulf %38, %42 : vector<8x128xf32>
    %44 = arith.subf %43, %18 : vector<8x128xf32>
    %45 = arith.mulf %23, %44 : vector<8x128xf32>
    %46 = arith.addf %18, %45 : vector<8x128xf32>
    %47 = arith.subf %41, %20 : vector<8x128xf32>
    %48 = arith.mulf %23, %47 : vector<8x128xf32>
    %49 = arith.addf %20, %48 : vector<8x128xf32>
    %50 = arith.truncf %46 : vector<8x128xf32> to vector<8x128xbf16>
    %cst_26 = arith.constant dense<0.000000e+00> : vector<8x128xf32>
    %51 = tpu.matmul %50, %15, %cst_26 {dimension_numbers = #tpu.dot_dimension_numbers<[1], [0], [0], [1], [0, 0, 1, 1], [], []>} : vector<8x128xbf16>, vector<128x128xbf16>, vector<8x128xf32> -> vector<8x128xf32>
    %52 = arith.truncf %19 : vector<8x128xf32> to vector<8x128xbf16>
    %cst_27 = arith.constant dense<0.000000e+00> : vector<8x128xf32>
    %53 = tpu.matmul %52, %13, %cst_27 {dimension_numbers = #tpu.dot_dimension_numbers<[1], [0], [0], [1], [0, 0, 1, 1], [], []>} : vector<8x128xbf16>, vector<128x128xbf16>, vector<8x128xf32> -> vector<8x128xf32>
    %54 = arith.addf %51, %53 : vector<8x128xf32>
    %55 = arith.addf %54, %8 : vector<8x128xf32>
    %56 = arith.negf %55 : vector<8x128xf32>
    %57 = math.exp %56 : vector<8x128xf32>
    %cst_28 = arith.constant 1.000000e+00 : f32
    %58 = vector.broadcast %cst_28 : f32 to vector<8x128xf32>
    %59 = arith.addf %58, %57 : vector<8x128xf32>
    %60 = arith.divf %58, %59 : vector<8x128xf32>
    %61 = arith.mulf %60, %2 : vector<8x128xf32>
    %62 = arith.addf %61, %5 : vector<8x128xf32>
    %c96_i32_29 = arith.constant 96 : i32
    %63 = tpu.dynamic_rotate %62 by %c96_i32_29 dim 1 : vector<8x128xf32>, i32 -> vector<8x128xf32>
    %c64_i32_30 = arith.constant 64 : i32
    %64 = tpu.dynamic_rotate %62 by %c64_i32_30 dim 1 : vector<8x128xf32>, i32 -> vector<8x128xf32>
    %c32_i32_31 = arith.constant 32 : i32
    %65 = tpu.dynamic_rotate %62 by %c32_i32_31 dim 1 : vector<8x128xf32>, i32 -> vector<8x128xf32>
    %66 = arith.mulf %63, %21 : vector<8x128xf32>
    %67 = arith.mulf %62, %64 : vector<8x128xf32>
    %68 = arith.addf %66, %67 : vector<8x128xf32>
    %69 = math.tanh %68 : vector<8x128xf32>
    %70 = arith.mulf %65, %69 : vector<8x128xf32>
    %71 = arith.subf %70, %19 : vector<8x128xf32>
    %72 = arith.mulf %23, %71 : vector<8x128xf32>
    %73 = arith.addf %19, %72 : vector<8x128xf32>
    %74 = arith.subf %68, %21 : vector<8x128xf32>
    %75 = arith.mulf %23, %74 : vector<8x128xf32>
    %76 = arith.addf %21, %75 : vector<8x128xf32>
    %c9 = arith.constant 9 : index
    %c0_32 = arith.constant 0 : index
    %c0_33 = arith.constant 0 : index
    %77 = vector.load %arg0[%c9, %c0_32, %c0_33] : memref<16x8x128xf32, #tpu.memory_space<vmem>>, vector<1x8x128xf32>
    %78 = vector.shape_cast %77 : vector<1x8x128xf32> to vector<8x128xf32>
    %79 = arith.truncf %46 : vector<8x128xf32> to vector<8x128xbf16>
    %cst_34 = arith.constant dense<0.000000e+00> : vector<8x128xf32>
    %80 = tpu.matmul %79, %11, %cst_34 {dimension_numbers = #tpu.dot_dimension_numbers<[1], [0], [0], [1], [0, 0, 1, 1], [], []>} : vector<8x128xbf16>, vector<128x128xbf16>, vector<8x128xf32> -> vector<8x128xf32>
    %c1_35 = arith.constant 1 : index
    %c0_36 = arith.constant 0 : index
    %c0_37 = arith.constant 0 : index
    %81 = vector.load %arg0[%c1_35, %c0_36, %c0_37] : memref<16x8x128xf32, #tpu.memory_space<vmem>>, vector<1x8x128xf32>
    %82 = vector.shape_cast %81 : vector<1x8x128xf32> to vector<8x128xf32>
    %83 = arith.addf %80, %82 : vector<8x128xf32>
    %84 = arith.negf %83 : vector<8x128xf32>
    %85 = math.exp %84 : vector<8x128xf32>
    %cst_38 = arith.constant 1.000000e+00 : f32
    %86 = vector.broadcast %cst_38 : f32 to vector<8x128xf32>
    %87 = arith.addf %86, %85 : vector<8x128xf32>
    %88 = arith.divf %86, %87 : vector<8x128xf32>
    %89 = arith.mulf %88, %2 : vector<8x128xf32>
    %90 = arith.addf %89, %5 : vector<8x128xf32>
    %c96_i32_39 = arith.constant 96 : i32
    %91 = tpu.dynamic_rotate %90 by %c96_i32_39 dim 1 : vector<8x128xf32>, i32 -> vector<8x128xf32>
    %c64_i32_40 = arith.constant 64 : i32
    %92 = tpu.dynamic_rotate %90 by %c64_i32_40 dim 1 : vector<8x128xf32>, i32 -> vector<8x128xf32>
    %c32_i32_41 = arith.constant 32 : i32
    %93 = tpu.dynamic_rotate %90 by %c32_i32_41 dim 1 : vector<8x128xf32>, i32 -> vector<8x128xf32>
    %94 = arith.mulf %91, %49 : vector<8x128xf32>
    %95 = arith.mulf %90, %92 : vector<8x128xf32>
    %96 = arith.addf %94, %95 : vector<8x128xf32>
    %97 = math.tanh %96 : vector<8x128xf32>
    %98 = arith.mulf %93, %97 : vector<8x128xf32>
    %99 = arith.subf %98, %46 : vector<8x128xf32>
    %100 = arith.mulf %78, %99 : vector<8x128xf32>
    %101 = arith.addf %46, %100 : vector<8x128xf32>
    %102 = arith.subf %96, %49 : vector<8x128xf32>
    %103 = arith.mulf %78, %102 : vector<8x128xf32>
    %104 = arith.addf %49, %103 : vector<8x128xf32>
    %105 = arith.truncf %101 : vector<8x128xf32> to vector<8x128xbf16>
    %cst_42 = arith.constant dense<0.000000e+00> : vector<8x128xf32>
    %106 = tpu.matmul %105, %15, %cst_42 {dimension_numbers = #tpu.dot_dimension_numbers<[1], [0], [0], [1], [0, 0, 1, 1], [], []>} : vector<8x128xbf16>, vector<128x128xbf16>, vector<8x128xf32> -> vector<8x128xf32>
    %107 = arith.truncf %73 : vector<8x128xf32> to vector<8x128xbf16>
    %cst_43 = arith.constant dense<0.000000e+00> : vector<8x128xf32>
    %108 = tpu.matmul %107, %13, %cst_43 {dimension_numbers = #tpu.dot_dimension_numbers<[1], [0], [0], [1], [0, 0, 1, 1], [], []>} : vector<8x128xbf16>, vector<128x128xbf16>, vector<8x128xf32> -> vector<8x128xf32>
    %109 = arith.addf %106, %108 : vector<8x128xf32>
    %110 = arith.addf %109, %8 : vector<8x128xf32>
    %111 = arith.negf %110 : vector<8x128xf32>
    %112 = math.exp %111 : vector<8x128xf32>
    %cst_44 = arith.constant 1.000000e+00 : f32
    %113 = vector.broadcast %cst_44 : f32 to vector<8x128xf32>
    %114 = arith.addf %113, %112 : vector<8x128xf32>
    %115 = arith.divf %113, %114 : vector<8x128xf32>
    %116 = arith.mulf %115, %2 : vector<8x128xf32>
    %117 = arith.addf %116, %5 : vector<8x128xf32>
    %c96_i32_45 = arith.constant 96 : i32
    %118 = tpu.dynamic_rotate %117 by %c96_i32_45 dim 1 : vector<8x128xf32>, i32 -> vector<8x128xf32>
    %c64_i32_46 = arith.constant 64 : i32
    %119 = tpu.dynamic_rotate %117 by %c64_i32_46 dim 1 : vector<8x128xf32>, i32 -> vector<8x128xf32>
    %c32_i32_47 = arith.constant 32 : i32
    %120 = tpu.dynamic_rotate %117 by %c32_i32_47 dim 1 : vector<8x128xf32>, i32 -> vector<8x128xf32>
    %121 = arith.mulf %118, %76 : vector<8x128xf32>
    %122 = arith.mulf %117, %119 : vector<8x128xf32>
    %123 = arith.addf %121, %122 : vector<8x128xf32>
    %124 = math.tanh %123 : vector<8x128xf32>
    %125 = arith.mulf %120, %124 : vector<8x128xf32>
    %126 = arith.subf %125, %73 : vector<8x128xf32>
    %127 = arith.mulf %78, %126 : vector<8x128xf32>
    %128 = arith.addf %73, %127 : vector<8x128xf32>
    %129 = arith.subf %123, %76 : vector<8x128xf32>
    %130 = arith.mulf %78, %129 : vector<8x128xf32>
    %131 = arith.addf %76, %130 : vector<8x128xf32>
    %c10 = arith.constant 10 : index
    %c0_48 = arith.constant 0 : index
    %c0_49 = arith.constant 0 : index
    %132 = vector.load %arg0[%c10, %c0_48, %c0_49] : memref<16x8x128xf32, #tpu.memory_space<vmem>>, vector<1x8x128xf32>
    %133 = vector.shape_cast %132 : vector<1x8x128xf32> to vector<8x128xf32>
    %134 = arith.truncf %101 : vector<8x128xf32> to vector<8x128xbf16>
    %cst_50 = arith.constant dense<0.000000e+00> : vector<8x128xf32>
    %135 = tpu.matmul %134, %11, %cst_50 {dimension_numbers = #tpu.dot_dimension_numbers<[1], [0], [0], [1], [0, 0, 1, 1], [], []>} : vector<8x128xbf16>, vector<128x128xbf16>, vector<8x128xf32> -> vector<8x128xf32>
    %c2_51 = arith.constant 2 : index
    %c0_52 = arith.constant 0 : index
    %c0_53 = arith.constant 0 : index
    %136 = vector.load %arg0[%c2_51, %c0_52, %c0_53] : memref<16x8x128xf32, #tpu.memory_space<vmem>>, vector<1x8x128xf32>
    %137 = vector.shape_cast %136 : vector<1x8x128xf32> to vector<8x128xf32>
    %138 = arith.addf %135, %137 : vector<8x128xf32>
    %139 = arith.negf %138 : vector<8x128xf32>
    %140 = math.exp %139 : vector<8x128xf32>
    %cst_54 = arith.constant 1.000000e+00 : f32
    %141 = vector.broadcast %cst_54 : f32 to vector<8x128xf32>
    %142 = arith.addf %141, %140 : vector<8x128xf32>
    %143 = arith.divf %141, %142 : vector<8x128xf32>
    %144 = arith.mulf %143, %2 : vector<8x128xf32>
    %145 = arith.addf %144, %5 : vector<8x128xf32>
    %c96_i32_55 = arith.constant 96 : i32
    %146 = tpu.dynamic_rotate %145 by %c96_i32_55 dim 1 : vector<8x128xf32>, i32 -> vector<8x128xf32>
    %c64_i32_56 = arith.constant 64 : i32
    %147 = tpu.dynamic_rotate %145 by %c64_i32_56 dim 1 : vector<8x128xf32>, i32 -> vector<8x128xf32>
    %c32_i32_57 = arith.constant 32 : i32
    %148 = tpu.dynamic_rotate %145 by %c32_i32_57 dim 1 : vector<8x128xf32>, i32 -> vector<8x128xf32>
    %149 = arith.mulf %146, %104 : vector<8x128xf32>
    %150 = arith.mulf %145, %147 : vector<8x128xf32>
    %151 = arith.addf %149, %150 : vector<8x128xf32>
    %152 = math.tanh %151 : vector<8x128xf32>
    %153 = arith.mulf %148, %152 : vector<8x128xf32>
    %154 = arith.subf %153, %101 : vector<8x128xf32>
    %155 = arith.mulf %133, %154 : vector<8x128xf32>
    %156 = arith.addf %101, %155 : vector<8x128xf32>
    %157 = arith.subf %151, %104 : vector<8x128xf32>
    %158 = arith.mulf %133, %157 : vector<8x128xf32>
    %159 = arith.addf %104, %158 : vector<8x128xf32>
    %160 = arith.truncf %156 : vector<8x128xf32> to vector<8x128xbf16>
    %cst_58 = arith.constant dense<0.000000e+00> : vector<8x128xf32>
    %161 = tpu.matmul %160, %15, %cst_58 {dimension_numbers = #tpu.dot_dimension_numbers<[1], [0], [0], [1], [0, 0, 1, 1], [], []>} : vector<8x128xbf16>, vector<128x128xbf16>, vector<8x128xf32> -> vector<8x128xf32>
    %162 = arith.truncf %128 : vector<8x128xf32> to vector<8x128xbf16>
    %cst_59 = arith.constant dense<0.000000e+00> : vector<8x128xf32>
    %163 = tpu.matmul %162, %13, %cst_59 {dimension_numbers = #tpu.dot_dimension_numbers<[1], [0], [0], [1], [0, 0, 1, 1], [], []>} : vector<8x128xbf16>, vector<128x128xbf16>, vector<8x128xf32> -> vector<8x128xf32>
    %164 = arith.addf %161, %163 : vector<8x128xf32>
    %165 = arith.addf %164, %8 : vector<8x128xf32>
    %166 = arith.negf %165 : vector<8x128xf32>
    %167 = math.exp %166 : vector<8x128xf32>
    %cst_60 = arith.constant 1.000000e+00 : f32
    %168 = vector.broadcast %cst_60 : f32 to vector<8x128xf32>
    %169 = arith.addf %168, %167 : vector<8x128xf32>
    %170 = arith.divf %168, %169 : vector<8x128xf32>
    %171 = arith.mulf %170, %2 : vector<8x128xf32>
    %172 = arith.addf %171, %5 : vector<8x128xf32>
    %c96_i32_61 = arith.constant 96 : i32
    %173 = tpu.dynamic_rotate %172 by %c96_i32_61 dim 1 : vector<8x128xf32>, i32 -> vector<8x128xf32>
    %c64_i32_62 = arith.constant 64 : i32
    %174 = tpu.dynamic_rotate %172 by %c64_i32_62 dim 1 : vector<8x128xf32>, i32 -> vector<8x128xf32>
    %c32_i32_63 = arith.constant 32 : i32
    %175 = tpu.dynamic_rotate %172 by %c32_i32_63 dim 1 : vector<8x128xf32>, i32 -> vector<8x128xf32>
    %176 = arith.mulf %173, %131 : vector<8x128xf32>
    %177 = arith.mulf %172, %174 : vector<8x128xf32>
    %178 = arith.addf %176, %177 : vector<8x128xf32>
    %179 = math.tanh %178 : vector<8x128xf32>
    %180 = arith.mulf %175, %179 : vector<8x128xf32>
    %181 = arith.subf %180, %128 : vector<8x128xf32>
    %182 = arith.mulf %133, %181 : vector<8x128xf32>
    %183 = arith.addf %128, %182 : vector<8x128xf32>
    %184 = arith.subf %178, %131 : vector<8x128xf32>
    %185 = arith.mulf %133, %184 : vector<8x128xf32>
    %186 = arith.addf %131, %185 : vector<8x128xf32>
    %c11 = arith.constant 11 : index
    %c0_64 = arith.constant 0 : index
    %c0_65 = arith.constant 0 : index
    %187 = vector.load %arg0[%c11, %c0_64, %c0_65] : memref<16x8x128xf32, #tpu.memory_space<vmem>>, vector<1x8x128xf32>
    %188 = vector.shape_cast %187 : vector<1x8x128xf32> to vector<8x128xf32>
    %189 = arith.truncf %156 : vector<8x128xf32> to vector<8x128xbf16>
    %cst_66 = arith.constant dense<0.000000e+00> : vector<8x128xf32>
    %190 = tpu.matmul %189, %11, %cst_66 {dimension_numbers = #tpu.dot_dimension_numbers<[1], [0], [0], [1], [0, 0, 1, 1], [], []>} : vector<8x128xbf16>, vector<128x128xbf16>, vector<8x128xf32> -> vector<8x128xf32>
    %c3_67 = arith.constant 3 : index
    %c0_68 = arith.constant 0 : index
    %c0_69 = arith.constant 0 : index
    %191 = vector.load %arg0[%c3_67, %c0_68, %c0_69] : memref<16x8x128xf32, #tpu.memory_space<vmem>>, vector<1x8x128xf32>
    %192 = vector.shape_cast %191 : vector<1x8x128xf32> to vector<8x128xf32>
    %193 = arith.addf %190, %192 : vector<8x128xf32>
    %194 = arith.negf %193 : vector<8x128xf32>
    %195 = math.exp %194 : vector<8x128xf32>
    %cst_70 = arith.constant 1.000000e+00 : f32
    %196 = vector.broadcast %cst_70 : f32 to vector<8x128xf32>
    %197 = arith.addf %196, %195 : vector<8x128xf32>
    %198 = arith.divf %196, %197 : vector<8x128xf32>
    %199 = arith.mulf %198, %2 : vector<8x128xf32>
    %200 = arith.addf %199, %5 : vector<8x128xf32>
    %c96_i32_71 = arith.constant 96 : i32
    %201 = tpu.dynamic_rotate %200 by %c96_i32_71 dim 1 : vector<8x128xf32>, i32 -> vector<8x128xf32>
    %c64_i32_72 = arith.constant 64 : i32
    %202 = tpu.dynamic_rotate %200 by %c64_i32_72 dim 1 : vector<8x128xf32>, i32 -> vector<8x128xf32>
    %c32_i32_73 = arith.constant 32 : i32
    %203 = tpu.dynamic_rotate %200 by %c32_i32_73 dim 1 : vector<8x128xf32>, i32 -> vector<8x128xf32>
    %204 = arith.mulf %201, %159 : vector<8x128xf32>
    %205 = arith.mulf %200, %202 : vector<8x128xf32>
    %206 = arith.addf %204, %205 : vector<8x128xf32>
    %207 = math.tanh %206 : vector<8x128xf32>
    %208 = arith.mulf %203, %207 : vector<8x128xf32>
    %209 = arith.subf %208, %156 : vector<8x128xf32>
    %210 = arith.mulf %188, %209 : vector<8x128xf32>
    %211 = arith.addf %156, %210 : vector<8x128xf32>
    %212 = arith.subf %206, %159 : vector<8x128xf32>
    %213 = arith.mulf %188, %212 : vector<8x128xf32>
    %214 = arith.addf %159, %213 : vector<8x128xf32>
    %215 = arith.truncf %211 : vector<8x128xf32> to vector<8x128xbf16>
    %cst_74 = arith.constant dense<0.000000e+00> : vector<8x128xf32>
    %216 = tpu.matmul %215, %15, %cst_74 {dimension_numbers = #tpu.dot_dimension_numbers<[1], [0], [0], [1], [0, 0, 1, 1], [], []>} : vector<8x128xbf16>, vector<128x128xbf16>, vector<8x128xf32> -> vector<8x128xf32>
    %217 = arith.truncf %183 : vector<8x128xf32> to vector<8x128xbf16>
    %cst_75 = arith.constant dense<0.000000e+00> : vector<8x128xf32>
    %218 = tpu.matmul %217, %13, %cst_75 {dimension_numbers = #tpu.dot_dimension_numbers<[1], [0], [0], [1], [0, 0, 1, 1], [], []>} : vector<8x128xbf16>, vector<128x128xbf16>, vector<8x128xf32> -> vector<8x128xf32>
    %219 = arith.addf %216, %218 : vector<8x128xf32>
    %220 = arith.addf %219, %8 : vector<8x128xf32>
    %221 = arith.negf %220 : vector<8x128xf32>
    %222 = math.exp %221 : vector<8x128xf32>
    %cst_76 = arith.constant 1.000000e+00 : f32
    %223 = vector.broadcast %cst_76 : f32 to vector<8x128xf32>
    %224 = arith.addf %223, %222 : vector<8x128xf32>
    %225 = arith.divf %223, %224 : vector<8x128xf32>
    %226 = arith.mulf %225, %2 : vector<8x128xf32>
    %227 = arith.addf %226, %5 : vector<8x128xf32>
    %c96_i32_77 = arith.constant 96 : i32
    %228 = tpu.dynamic_rotate %227 by %c96_i32_77 dim 1 : vector<8x128xf32>, i32 -> vector<8x128xf32>
    %c64_i32_78 = arith.constant 64 : i32
    %229 = tpu.dynamic_rotate %227 by %c64_i32_78 dim 1 : vector<8x128xf32>, i32 -> vector<8x128xf32>
    %c32_i32_79 = arith.constant 32 : i32
    %230 = tpu.dynamic_rotate %227 by %c32_i32_79 dim 1 : vector<8x128xf32>, i32 -> vector<8x128xf32>
    %231 = arith.mulf %228, %186 : vector<8x128xf32>
    %232 = arith.mulf %227, %229 : vector<8x128xf32>
    %233 = arith.addf %231, %232 : vector<8x128xf32>
    %234 = math.tanh %233 : vector<8x128xf32>
    %235 = arith.mulf %230, %234 : vector<8x128xf32>
    %236 = arith.subf %235, %183 : vector<8x128xf32>
    %237 = arith.mulf %188, %236 : vector<8x128xf32>
    %238 = arith.addf %183, %237 : vector<8x128xf32>
    %239 = arith.subf %233, %186 : vector<8x128xf32>
    %240 = arith.mulf %188, %239 : vector<8x128xf32>
    %241 = arith.addf %186, %240 : vector<8x128xf32>
    %c12 = arith.constant 12 : index
    %c0_80 = arith.constant 0 : index
    %c0_81 = arith.constant 0 : index
    %242 = vector.load %arg0[%c12, %c0_80, %c0_81] : memref<16x8x128xf32, #tpu.memory_space<vmem>>, vector<1x8x128xf32>
    %243 = vector.shape_cast %242 : vector<1x8x128xf32> to vector<8x128xf32>
    %244 = arith.truncf %211 : vector<8x128xf32> to vector<8x128xbf16>
    %cst_82 = arith.constant dense<0.000000e+00> : vector<8x128xf32>
    %245 = tpu.matmul %244, %11, %cst_82 {dimension_numbers = #tpu.dot_dimension_numbers<[1], [0], [0], [1], [0, 0, 1, 1], [], []>} : vector<8x128xbf16>, vector<128x128xbf16>, vector<8x128xf32> -> vector<8x128xf32>
    %c4 = arith.constant 4 : index
    %c0_83 = arith.constant 0 : index
    %c0_84 = arith.constant 0 : index
    %246 = vector.load %arg0[%c4, %c0_83, %c0_84] : memref<16x8x128xf32, #tpu.memory_space<vmem>>, vector<1x8x128xf32>
    %247 = vector.shape_cast %246 : vector<1x8x128xf32> to vector<8x128xf32>
    %248 = arith.addf %245, %247 : vector<8x128xf32>
    %249 = arith.negf %248 : vector<8x128xf32>
    %250 = math.exp %249 : vector<8x128xf32>
    %cst_85 = arith.constant 1.000000e+00 : f32
    %251 = vector.broadcast %cst_85 : f32 to vector<8x128xf32>
    %252 = arith.addf %251, %250 : vector<8x128xf32>
    %253 = arith.divf %251, %252 : vector<8x128xf32>
    %254 = arith.mulf %253, %2 : vector<8x128xf32>
    %255 = arith.addf %254, %5 : vector<8x128xf32>
    %c96_i32_86 = arith.constant 96 : i32
    %256 = tpu.dynamic_rotate %255 by %c96_i32_86 dim 1 : vector<8x128xf32>, i32 -> vector<8x128xf32>
    %c64_i32_87 = arith.constant 64 : i32
    %257 = tpu.dynamic_rotate %255 by %c64_i32_87 dim 1 : vector<8x128xf32>, i32 -> vector<8x128xf32>
    %c32_i32_88 = arith.constant 32 : i32
    %258 = tpu.dynamic_rotate %255 by %c32_i32_88 dim 1 : vector<8x128xf32>, i32 -> vector<8x128xf32>
    %259 = arith.mulf %256, %214 : vector<8x128xf32>
    %260 = arith.mulf %255, %257 : vector<8x128xf32>
    %261 = arith.addf %259, %260 : vector<8x128xf32>
    %262 = math.tanh %261 : vector<8x128xf32>
    %263 = arith.mulf %258, %262 : vector<8x128xf32>
    %264 = arith.subf %263, %211 : vector<8x128xf32>
    %265 = arith.mulf %243, %264 : vector<8x128xf32>
    %266 = arith.addf %211, %265 : vector<8x128xf32>
    %267 = arith.subf %261, %214 : vector<8x128xf32>
    %268 = arith.mulf %243, %267 : vector<8x128xf32>
    %269 = arith.addf %214, %268 : vector<8x128xf32>
    %270 = arith.truncf %266 : vector<8x128xf32> to vector<8x128xbf16>
    %cst_89 = arith.constant dense<0.000000e+00> : vector<8x128xf32>
    %271 = tpu.matmul %270, %15, %cst_89 {dimension_numbers = #tpu.dot_dimension_numbers<[1], [0], [0], [1], [0, 0, 1, 1], [], []>} : vector<8x128xbf16>, vector<128x128xbf16>, vector<8x128xf32> -> vector<8x128xf32>
    %272 = arith.truncf %238 : vector<8x128xf32> to vector<8x128xbf16>
    %cst_90 = arith.constant dense<0.000000e+00> : vector<8x128xf32>
    %273 = tpu.matmul %272, %13, %cst_90 {dimension_numbers = #tpu.dot_dimension_numbers<[1], [0], [0], [1], [0, 0, 1, 1], [], []>} : vector<8x128xbf16>, vector<128x128xbf16>, vector<8x128xf32> -> vector<8x128xf32>
    %274 = arith.addf %271, %273 : vector<8x128xf32>
    %275 = arith.addf %274, %8 : vector<8x128xf32>
    %276 = arith.negf %275 : vector<8x128xf32>
    %277 = math.exp %276 : vector<8x128xf32>
    %cst_91 = arith.constant 1.000000e+00 : f32
    %278 = vector.broadcast %cst_91 : f32 to vector<8x128xf32>
    %279 = arith.addf %278, %277 : vector<8x128xf32>
    %280 = arith.divf %278, %279 : vector<8x128xf32>
    %281 = arith.mulf %280, %2 : vector<8x128xf32>
    %282 = arith.addf %281, %5 : vector<8x128xf32>
    %c96_i32_92 = arith.constant 96 : i32
    %283 = tpu.dynamic_rotate %282 by %c96_i32_92 dim 1 : vector<8x128xf32>, i32 -> vector<8x128xf32>
    %c64_i32_93 = arith.constant 64 : i32
    %284 = tpu.dynamic_rotate %282 by %c64_i32_93 dim 1 : vector<8x128xf32>, i32 -> vector<8x128xf32>
    %c32_i32_94 = arith.constant 32 : i32
    %285 = tpu.dynamic_rotate %282 by %c32_i32_94 dim 1 : vector<8x128xf32>, i32 -> vector<8x128xf32>
    %286 = arith.mulf %283, %241 : vector<8x128xf32>
    %287 = arith.mulf %282, %284 : vector<8x128xf32>
    %288 = arith.addf %286, %287 : vector<8x128xf32>
    %289 = math.tanh %288 : vector<8x128xf32>
    %290 = arith.mulf %285, %289 : vector<8x128xf32>
    %291 = arith.subf %290, %238 : vector<8x128xf32>
    %292 = arith.mulf %243, %291 : vector<8x128xf32>
    %293 = arith.addf %238, %292 : vector<8x128xf32>
    %294 = arith.subf %288, %241 : vector<8x128xf32>
    %295 = arith.mulf %243, %294 : vector<8x128xf32>
    %296 = arith.addf %241, %295 : vector<8x128xf32>
    %c13 = arith.constant 13 : index
    %c0_95 = arith.constant 0 : index
    %c0_96 = arith.constant 0 : index
    %297 = vector.load %arg0[%c13, %c0_95, %c0_96] : memref<16x8x128xf32, #tpu.memory_space<vmem>>, vector<1x8x128xf32>
    %298 = vector.shape_cast %297 : vector<1x8x128xf32> to vector<8x128xf32>
    %299 = arith.truncf %266 : vector<8x128xf32> to vector<8x128xbf16>
    %cst_97 = arith.constant dense<0.000000e+00> : vector<8x128xf32>
    %300 = tpu.matmul %299, %11, %cst_97 {dimension_numbers = #tpu.dot_dimension_numbers<[1], [0], [0], [1], [0, 0, 1, 1], [], []>} : vector<8x128xbf16>, vector<128x128xbf16>, vector<8x128xf32> -> vector<8x128xf32>
    %c5 = arith.constant 5 : index
    %c0_98 = arith.constant 0 : index
    %c0_99 = arith.constant 0 : index
    %301 = vector.load %arg0[%c5, %c0_98, %c0_99] : memref<16x8x128xf32, #tpu.memory_space<vmem>>, vector<1x8x128xf32>
    %302 = vector.shape_cast %301 : vector<1x8x128xf32> to vector<8x128xf32>
    %303 = arith.addf %300, %302 : vector<8x128xf32>
    %304 = arith.negf %303 : vector<8x128xf32>
    %305 = math.exp %304 : vector<8x128xf32>
    %cst_100 = arith.constant 1.000000e+00 : f32
    %306 = vector.broadcast %cst_100 : f32 to vector<8x128xf32>
    %307 = arith.addf %306, %305 : vector<8x128xf32>
    %308 = arith.divf %306, %307 : vector<8x128xf32>
    %309 = arith.mulf %308, %2 : vector<8x128xf32>
    %310 = arith.addf %309, %5 : vector<8x128xf32>
    %c96_i32_101 = arith.constant 96 : i32
    %311 = tpu.dynamic_rotate %310 by %c96_i32_101 dim 1 : vector<8x128xf32>, i32 -> vector<8x128xf32>
    %c64_i32_102 = arith.constant 64 : i32
    %312 = tpu.dynamic_rotate %310 by %c64_i32_102 dim 1 : vector<8x128xf32>, i32 -> vector<8x128xf32>
    %c32_i32_103 = arith.constant 32 : i32
    %313 = tpu.dynamic_rotate %310 by %c32_i32_103 dim 1 : vector<8x128xf32>, i32 -> vector<8x128xf32>
    %314 = arith.mulf %311, %269 : vector<8x128xf32>
    %315 = arith.mulf %310, %312 : vector<8x128xf32>
    %316 = arith.addf %314, %315 : vector<8x128xf32>
    %317 = math.tanh %316 : vector<8x128xf32>
    %318 = arith.mulf %313, %317 : vector<8x128xf32>
    %319 = arith.subf %318, %266 : vector<8x128xf32>
    %320 = arith.mulf %298, %319 : vector<8x128xf32>
    %321 = arith.addf %266, %320 : vector<8x128xf32>
    %322 = arith.subf %316, %269 : vector<8x128xf32>
    %323 = arith.mulf %298, %322 : vector<8x128xf32>
    %324 = arith.addf %269, %323 : vector<8x128xf32>
    %325 = arith.truncf %321 : vector<8x128xf32> to vector<8x128xbf16>
    %cst_104 = arith.constant dense<0.000000e+00> : vector<8x128xf32>
    %326 = tpu.matmul %325, %15, %cst_104 {dimension_numbers = #tpu.dot_dimension_numbers<[1], [0], [0], [1], [0, 0, 1, 1], [], []>} : vector<8x128xbf16>, vector<128x128xbf16>, vector<8x128xf32> -> vector<8x128xf32>
    %327 = arith.truncf %293 : vector<8x128xf32> to vector<8x128xbf16>
    %cst_105 = arith.constant dense<0.000000e+00> : vector<8x128xf32>
    %328 = tpu.matmul %327, %13, %cst_105 {dimension_numbers = #tpu.dot_dimension_numbers<[1], [0], [0], [1], [0, 0, 1, 1], [], []>} : vector<8x128xbf16>, vector<128x128xbf16>, vector<8x128xf32> -> vector<8x128xf32>
    %329 = arith.addf %326, %328 : vector<8x128xf32>
    %330 = arith.addf %329, %8 : vector<8x128xf32>
    %331 = arith.negf %330 : vector<8x128xf32>
    %332 = math.exp %331 : vector<8x128xf32>
    %cst_106 = arith.constant 1.000000e+00 : f32
    %333 = vector.broadcast %cst_106 : f32 to vector<8x128xf32>
    %334 = arith.addf %333, %332 : vector<8x128xf32>
    %335 = arith.divf %333, %334 : vector<8x128xf32>
    %336 = arith.mulf %335, %2 : vector<8x128xf32>
    %337 = arith.addf %336, %5 : vector<8x128xf32>
    %c96_i32_107 = arith.constant 96 : i32
    %338 = tpu.dynamic_rotate %337 by %c96_i32_107 dim 1 : vector<8x128xf32>, i32 -> vector<8x128xf32>
    %c64_i32_108 = arith.constant 64 : i32
    %339 = tpu.dynamic_rotate %337 by %c64_i32_108 dim 1 : vector<8x128xf32>, i32 -> vector<8x128xf32>
    %c32_i32_109 = arith.constant 32 : i32
    %340 = tpu.dynamic_rotate %337 by %c32_i32_109 dim 1 : vector<8x128xf32>, i32 -> vector<8x128xf32>
    %341 = arith.mulf %338, %296 : vector<8x128xf32>
    %342 = arith.mulf %337, %339 : vector<8x128xf32>
    %343 = arith.addf %341, %342 : vector<8x128xf32>
    %344 = math.tanh %343 : vector<8x128xf32>
    %345 = arith.mulf %340, %344 : vector<8x128xf32>
    %346 = arith.subf %345, %293 : vector<8x128xf32>
    %347 = arith.mulf %298, %346 : vector<8x128xf32>
    %348 = arith.addf %293, %347 : vector<8x128xf32>
    %349 = arith.subf %343, %296 : vector<8x128xf32>
    %350 = arith.mulf %298, %349 : vector<8x128xf32>
    %351 = arith.addf %296, %350 : vector<8x128xf32>
    %c14 = arith.constant 14 : index
    %c0_110 = arith.constant 0 : index
    %c0_111 = arith.constant 0 : index
    %352 = vector.load %arg0[%c14, %c0_110, %c0_111] : memref<16x8x128xf32, #tpu.memory_space<vmem>>, vector<1x8x128xf32>
    %353 = vector.shape_cast %352 : vector<1x8x128xf32> to vector<8x128xf32>
    %354 = arith.truncf %321 : vector<8x128xf32> to vector<8x128xbf16>
    %cst_112 = arith.constant dense<0.000000e+00> : vector<8x128xf32>
    %355 = tpu.matmul %354, %11, %cst_112 {dimension_numbers = #tpu.dot_dimension_numbers<[1], [0], [0], [1], [0, 0, 1, 1], [], []>} : vector<8x128xbf16>, vector<128x128xbf16>, vector<8x128xf32> -> vector<8x128xf32>
    %c6 = arith.constant 6 : index
    %c0_113 = arith.constant 0 : index
    %c0_114 = arith.constant 0 : index
    %356 = vector.load %arg0[%c6, %c0_113, %c0_114] : memref<16x8x128xf32, #tpu.memory_space<vmem>>, vector<1x8x128xf32>
    %357 = vector.shape_cast %356 : vector<1x8x128xf32> to vector<8x128xf32>
    %358 = arith.addf %355, %357 : vector<8x128xf32>
    %359 = arith.negf %358 : vector<8x128xf32>
    %360 = math.exp %359 : vector<8x128xf32>
    %cst_115 = arith.constant 1.000000e+00 : f32
    %361 = vector.broadcast %cst_115 : f32 to vector<8x128xf32>
    %362 = arith.addf %361, %360 : vector<8x128xf32>
    %363 = arith.divf %361, %362 : vector<8x128xf32>
    %364 = arith.mulf %363, %2 : vector<8x128xf32>
    %365 = arith.addf %364, %5 : vector<8x128xf32>
    %c96_i32_116 = arith.constant 96 : i32
    %366 = tpu.dynamic_rotate %365 by %c96_i32_116 dim 1 : vector<8x128xf32>, i32 -> vector<8x128xf32>
    %c64_i32_117 = arith.constant 64 : i32
    %367 = tpu.dynamic_rotate %365 by %c64_i32_117 dim 1 : vector<8x128xf32>, i32 -> vector<8x128xf32>
    %c32_i32_118 = arith.constant 32 : i32
    %368 = tpu.dynamic_rotate %365 by %c32_i32_118 dim 1 : vector<8x128xf32>, i32 -> vector<8x128xf32>
    %369 = arith.mulf %366, %324 : vector<8x128xf32>
    %370 = arith.mulf %365, %367 : vector<8x128xf32>
    %371 = arith.addf %369, %370 : vector<8x128xf32>
    %372 = math.tanh %371 : vector<8x128xf32>
    %373 = arith.mulf %368, %372 : vector<8x128xf32>
    %374 = arith.subf %373, %321 : vector<8x128xf32>
    %375 = arith.mulf %353, %374 : vector<8x128xf32>
    %376 = arith.addf %321, %375 : vector<8x128xf32>
    %377 = arith.subf %371, %324 : vector<8x128xf32>
    %378 = arith.mulf %353, %377 : vector<8x128xf32>
    %379 = arith.addf %324, %378 : vector<8x128xf32>
    %380 = arith.truncf %376 : vector<8x128xf32> to vector<8x128xbf16>
    %cst_119 = arith.constant dense<0.000000e+00> : vector<8x128xf32>
    %381 = tpu.matmul %380, %15, %cst_119 {dimension_numbers = #tpu.dot_dimension_numbers<[1], [0], [0], [1], [0, 0, 1, 1], [], []>} : vector<8x128xbf16>, vector<128x128xbf16>, vector<8x128xf32> -> vector<8x128xf32>
    %382 = arith.truncf %348 : vector<8x128xf32> to vector<8x128xbf16>
    %cst_120 = arith.constant dense<0.000000e+00> : vector<8x128xf32>
    %383 = tpu.matmul %382, %13, %cst_120 {dimension_numbers = #tpu.dot_dimension_numbers<[1], [0], [0], [1], [0, 0, 1, 1], [], []>} : vector<8x128xbf16>, vector<128x128xbf16>, vector<8x128xf32> -> vector<8x128xf32>
    %384 = arith.addf %381, %383 : vector<8x128xf32>
    %385 = arith.addf %384, %8 : vector<8x128xf32>
    %386 = arith.negf %385 : vector<8x128xf32>
    %387 = math.exp %386 : vector<8x128xf32>
    %cst_121 = arith.constant 1.000000e+00 : f32
    %388 = vector.broadcast %cst_121 : f32 to vector<8x128xf32>
    %389 = arith.addf %388, %387 : vector<8x128xf32>
    %390 = arith.divf %388, %389 : vector<8x128xf32>
    %391 = arith.mulf %390, %2 : vector<8x128xf32>
    %392 = arith.addf %391, %5 : vector<8x128xf32>
    %c96_i32_122 = arith.constant 96 : i32
    %393 = tpu.dynamic_rotate %392 by %c96_i32_122 dim 1 : vector<8x128xf32>, i32 -> vector<8x128xf32>
    %c64_i32_123 = arith.constant 64 : i32
    %394 = tpu.dynamic_rotate %392 by %c64_i32_123 dim 1 : vector<8x128xf32>, i32 -> vector<8x128xf32>
    %c32_i32_124 = arith.constant 32 : i32
    %395 = tpu.dynamic_rotate %392 by %c32_i32_124 dim 1 : vector<8x128xf32>, i32 -> vector<8x128xf32>
    %396 = arith.mulf %393, %351 : vector<8x128xf32>
    %397 = arith.mulf %392, %394 : vector<8x128xf32>
    %398 = arith.addf %396, %397 : vector<8x128xf32>
    %399 = math.tanh %398 : vector<8x128xf32>
    %400 = arith.mulf %395, %399 : vector<8x128xf32>
    %401 = arith.subf %400, %348 : vector<8x128xf32>
    %402 = arith.mulf %353, %401 : vector<8x128xf32>
    %403 = arith.addf %348, %402 : vector<8x128xf32>
    %404 = arith.subf %398, %351 : vector<8x128xf32>
    %405 = arith.mulf %353, %404 : vector<8x128xf32>
    %406 = arith.addf %351, %405 : vector<8x128xf32>
    %c15 = arith.constant 15 : index
    %c0_125 = arith.constant 0 : index
    %c0_126 = arith.constant 0 : index
    %407 = vector.load %arg0[%c15, %c0_125, %c0_126] : memref<16x8x128xf32, #tpu.memory_space<vmem>>, vector<1x8x128xf32>
    %408 = vector.shape_cast %407 : vector<1x8x128xf32> to vector<8x128xf32>
    %409 = arith.truncf %376 : vector<8x128xf32> to vector<8x128xbf16>
    %cst_127 = arith.constant dense<0.000000e+00> : vector<8x128xf32>
    %410 = tpu.matmul %409, %11, %cst_127 {dimension_numbers = #tpu.dot_dimension_numbers<[1], [0], [0], [1], [0, 0, 1, 1], [], []>} : vector<8x128xbf16>, vector<128x128xbf16>, vector<8x128xf32> -> vector<8x128xf32>
    %c7 = arith.constant 7 : index
    %c0_128 = arith.constant 0 : index
    %c0_129 = arith.constant 0 : index
    %411 = vector.load %arg0[%c7, %c0_128, %c0_129] : memref<16x8x128xf32, #tpu.memory_space<vmem>>, vector<1x8x128xf32>
    %412 = vector.shape_cast %411 : vector<1x8x128xf32> to vector<8x128xf32>
    %413 = arith.addf %410, %412 : vector<8x128xf32>
    %414 = arith.negf %413 : vector<8x128xf32>
    %415 = math.exp %414 : vector<8x128xf32>
    %cst_130 = arith.constant 1.000000e+00 : f32
    %416 = vector.broadcast %cst_130 : f32 to vector<8x128xf32>
    %417 = arith.addf %416, %415 : vector<8x128xf32>
    %418 = arith.divf %416, %417 : vector<8x128xf32>
    %419 = arith.mulf %418, %2 : vector<8x128xf32>
    %420 = arith.addf %419, %5 : vector<8x128xf32>
    %c96_i32_131 = arith.constant 96 : i32
    %421 = tpu.dynamic_rotate %420 by %c96_i32_131 dim 1 : vector<8x128xf32>, i32 -> vector<8x128xf32>
    %c64_i32_132 = arith.constant 64 : i32
    %422 = tpu.dynamic_rotate %420 by %c64_i32_132 dim 1 : vector<8x128xf32>, i32 -> vector<8x128xf32>
    %c32_i32_133 = arith.constant 32 : i32
    %423 = tpu.dynamic_rotate %420 by %c32_i32_133 dim 1 : vector<8x128xf32>, i32 -> vector<8x128xf32>
    %424 = arith.mulf %421, %379 : vector<8x128xf32>
    %425 = arith.mulf %420, %422 : vector<8x128xf32>
    %426 = arith.addf %424, %425 : vector<8x128xf32>
    %427 = math.tanh %426 : vector<8x128xf32>
    %428 = arith.mulf %423, %427 : vector<8x128xf32>
    %429 = arith.subf %428, %376 : vector<8x128xf32>
    %430 = arith.mulf %408, %429 : vector<8x128xf32>
    %431 = arith.addf %376, %430 : vector<8x128xf32>
    %432 = arith.truncf %431 : vector<8x128xf32> to vector<8x128xbf16>
    %cst_134 = arith.constant dense<0.000000e+00> : vector<8x128xf32>
    %433 = tpu.matmul %432, %15, %cst_134 {dimension_numbers = #tpu.dot_dimension_numbers<[1], [0], [0], [1], [0, 0, 1, 1], [], []>} : vector<8x128xbf16>, vector<128x128xbf16>, vector<8x128xf32> -> vector<8x128xf32>
    %434 = arith.truncf %403 : vector<8x128xf32> to vector<8x128xbf16>
    %cst_135 = arith.constant dense<0.000000e+00> : vector<8x128xf32>
    %435 = tpu.matmul %434, %13, %cst_135 {dimension_numbers = #tpu.dot_dimension_numbers<[1], [0], [0], [1], [0, 0, 1, 1], [], []>} : vector<8x128xbf16>, vector<128x128xbf16>, vector<8x128xf32> -> vector<8x128xf32>
    %436 = arith.addf %433, %435 : vector<8x128xf32>
    %437 = arith.addf %436, %8 : vector<8x128xf32>
    %438 = arith.negf %437 : vector<8x128xf32>
    %439 = math.exp %438 : vector<8x128xf32>
    %cst_136 = arith.constant 1.000000e+00 : f32
    %440 = vector.broadcast %cst_136 : f32 to vector<8x128xf32>
    %441 = arith.addf %440, %439 : vector<8x128xf32>
    %442 = arith.divf %440, %441 : vector<8x128xf32>
    %443 = arith.mulf %442, %2 : vector<8x128xf32>
    %444 = arith.addf %443, %5 : vector<8x128xf32>
    %c96_i32_137 = arith.constant 96 : i32
    %445 = tpu.dynamic_rotate %444 by %c96_i32_137 dim 1 : vector<8x128xf32>, i32 -> vector<8x128xf32>
    %c64_i32_138 = arith.constant 64 : i32
    %446 = tpu.dynamic_rotate %444 by %c64_i32_138 dim 1 : vector<8x128xf32>, i32 -> vector<8x128xf32>
    %c32_i32_139 = arith.constant 32 : i32
    %447 = tpu.dynamic_rotate %444 by %c32_i32_139 dim 1 : vector<8x128xf32>, i32 -> vector<8x128xf32>
    %448 = arith.mulf %445, %406 : vector<8x128xf32>
    %449 = arith.mulf %444, %446 : vector<8x128xf32>
    %450 = arith.addf %448, %449 : vector<8x128xf32>
    %451 = math.tanh %450 : vector<8x128xf32>
    %452 = arith.mulf %447, %451 : vector<8x128xf32>
    %453 = arith.subf %452, %403 : vector<8x128xf32>
    %454 = arith.mulf %408, %453 : vector<8x128xf32>
    %455 = arith.addf %403, %454 : vector<8x128xf32>
    %456 = arith.truncf %455 : vector<8x128xf32> to vector<8x128xbf16>
    %cst_140 = arith.constant dense<0.000000e+00> : vector<8x128xf32>
    %457 = tpu.matmul %456, %17, %cst_140 {dimension_numbers = #tpu.dot_dimension_numbers<[1], [0], [0], [1], [0, 0, 1, 1], [], []>} : vector<8x128xbf16>, vector<128x128xbf16>, vector<8x128xf32> -> vector<8x128xf32>
    %458 = vector.broadcast %9 : vector<1x128xf32> to vector<8x128xf32>
    %459 = arith.addf %457, %458 : vector<8x128xf32>
    %c0_141 = arith.constant 0 : index
    %c0_142 = arith.constant 0 : index
    %460 = vector.load %arg3[%c0_141, %c0_142] : memref<8x128xf32, #tpu.memory_space<vmem>>, vector<8x128xf32>
    tpu.vector_store %arg3[%c0_141, %c0_142], %459 {strides = array<i32>} : memref<8x128xf32, #tpu.memory_space<vmem>>, vector<8x128xf32>,
    return
  }
}

</mosaic_0001>

<llo_original>
// kernel: tpu_custom_call.1
$region0: #{tpu_custom_call.1}
  #allocation0 [shape = 'u32[]', space=smem, size = 0x4, offset = 0x4, fixed_abs, tag = 'smem constant byte address 0x4 - core index']
  #allocation1 [shape = 'u32[144,128]{1,0:T(1,128)}', space=vmem, size = 0x12000, scoped, tag = 'internal scratch']
  %s0 = inlined_call_operand.hbm [shape: f32[16,8,128], index: 0, kind: input, shape index: {}]
  %s1 = inlined_call_operand.hbm [shape: bf16[4,128,128], index: 1, kind: input, shape index: {}]
  %s2 = inlined_call_operand.vmem [shape: f32[4,128], index: 2, kind: input, shape index: {}]
  %s3 = inlined_call_operand.hbm [shape: f32[8,128], index: 3, kind: output, shape index: {}]
  %s4 = sld [smem:[#allocation0]]
  $region30: #{tpu_custom_call.1} parent=0
    _
  %s6 = ssub.s32 1, %s4
  %s7 = scalar_select 0, %s6, %s4
  $region1: #{tpu_custom_call.1} parent=0
    #allocation2 [shape = 'u8[65536]{0}', space=vmem, size = 0x10000, scoped, tag = 'input window, operand 0, single buffered']
    #allocation3 [shape = 's32[1]{0}', space=sflag, size = 0x4, scoped, tag = 'scoped memory for tpu_custom_call.1']
    #allocation4 [shape = 's32[1]{0}', space=sflag, size = 0x4, scoped, tag = 'scoped memory for tpu_custom_call.1']
    #allocation5 [shape = 'u8[131072]{0}', space=vmem, size = 0x20000, scoped, tag = 'input window, operand 1, single buffered']
    #allocation6 [shape = 's32[1]{0}', space=sflag, size = 0x4, scoped, tag = 'scoped memory for tpu_custom_call.1']
    #allocation7 [shape = 'u8[4096]{0}', space=vmem, size = 0x1000, scoped, tag = 'output window, operand 0, single buffered']
    %8 = vsyncpa [#allocation3], 0
    %9 = vsyncpa [#allocation6], 0
    %10 = vsyncpa [#allocation4], 0
    // Predicated region
    $region2: #{tpu_custom_call.1} parent=1 // pred_check
      _
    $region3: #{tpu_custom_call.1} parent=1 // pred_check_branch
      %12 = sbr.rel (0) target = $region5
    $region4: #{tpu_custom_call.1} parent=1 // pred_region
      %s14 = ssub.s32 2048, 2048
      %15 = vsyncadd [#allocation3], %s14
      %s16 = sshll.u32 [#allocation2], 4
      %s17 = int_to_ptr.vmem [resolvable:$true] %s16
      %22 = dma.hbm_to_vmem [thread:$0]  %s0, 2048, %s17, [#allocation3], 128, 128, 8
    $region5: #{tpu_custom_call.1} parent=1 // pred_fallthru
      _
    // Predicated region
    $region6: #{tpu_custom_call.1} parent=1 // pred_check
      _
    $region7: #{tpu_custom_call.1} parent=1 // pred_check_branch
      %24 = sbr.rel (0) target = $region9
    $region8: #{tpu_custom_call.1} parent=1 // pred_region
      %s26 = ssub.s32 4096, 4096
      %27 = vsyncadd [#allocation6], %s26
      %s28 = sshll.u32 [#allocation5], 4
      %s29 = int_to_ptr.vmem [resolvable:$true] %s28
      %34 = dma.hbm_to_vmem [thread:$0]  %s1, 4096, %s29, [#allocation6], 64, 64, 4
    $region9: #{tpu_custom_call.1} parent=1 // pred_fallthru
      _
    // Predicated region
    $region10: #{tpu_custom_call.1} parent=1 // pred_check
      _
    $region11: #{tpu_custom_call.1} parent=1 // pred_check_branch
      %36 = sbr.rel (0) target = $region13
    $region12: #{tpu_custom_call.1} parent=1 // pred_region
      _
    $region13: #{tpu_custom_call.1} parent=1 // pred_fallthru
      _
    // Predicated region
    $region14: #{tpu_custom_call.1} parent=1 // pred_check
      _
    $region15: #{tpu_custom_call.1} parent=1 // pred_check_branch
      %38 = sbr.rel (0) target = $region17
    $region16: #{tpu_custom_call.1} parent=1 // pred_region
      %39 = dma.done [#allocation3], 2048
    $region17: #{tpu_custom_call.1} parent=1 // pred_fallthru
      _
    // Predicated region
    $region18: #{tpu_custom_call.1} parent=1 // pred_check
      _
    $region19: #{tpu_custom_call.1} parent=1 // pred_check_branch
      %41 = sbr.rel (0) target = $region21
    $region20: #{tpu_custom_call.1} parent=1 // pred_region
      %42 = dma.done [#allocation6], 4096
    $region21: #{tpu_custom_call.1} parent=1 // pred_fallthru
      _
    %v44 = vld [vmem:[%s2] sm:$0x1]
    %v45 = vlaneseq
    %v46 = vshrl.u32 %v45, 7
    %v47 = vsub.s32 0, %v46
    %v48 = vrot.slane %v44, %v47
    %v49 = vld [vmem:[%s2 + $0x1] sm:$0x1]
    %v50 = vlaneseq
    %v51 = vshrl.u32 %v50, 7
    %v52 = vsub.s32 0, %v51
    %v53 = vrot.slane %v49, %v52
    %v54 = vld [vmem:[%s2 + $0x2] sm:$0x1]
    %v55 = vlaneseq
    %v56 = vshrl.u32 %v55, 7
    %v57 = vsub.s32 0, %v56
    %v58 = vrot.slane %v54, %v57
    %v59 = vld [vmem:[%s2 + $0x3] sm:$0x1]
    %v60 = vld [vmem:[#allocation5] sm:$0xf]
    %v61 = vld [vmem:[#allocation5 + $0x4] sm:$0xf]
    %v62 = vld [vmem:[#allocation5 + $0x8] sm:$0xf]
    %v63 = vld [vmem:[#allocation5 + $0xc] sm:$0xf]
    %v64 = vld [vmem:[#allocation5 + $0x10] sm:$0xf]
    %v65 = vld [vmem:[#allocation5 + $0x14] sm:$0xf]
    %v66 = vld [vmem:[#allocation5 + $0x18] sm:$0xf]
    %v67 = vld [vmem:[#allocation5 + $0x1c] sm:$0xf]
    %v68 = vld [vmem:[#allocation5 + $0x20] sm:$0xf]
    %v69 = vld [vmem:[#allocation5 + $0x24] sm:$0xf]
    %v70 = vld [vmem:[#allocation5 + $0x28] sm:$0xf]
    %v71 = vld [vmem:[#allocation5 + $0x2c] sm:$0xf]
    %v72 = vld [vmem:[#allocation5 + $0x30] sm:$0xf]
    %v73 = vld [vmem:[#allocation5 + $0x34] sm:$0xf]
    %v74 = vld [vmem:[#allocation5 + $0x38] sm:$0xf]
    %v75 = vld [vmem:[#allocation5 + $0x3c] sm:$0xf]
    %s76 = scalar_lea.vmem [#allocation5], 64
    %v77 = vld [vmem:[%s76] sm:$0xf]
    %v78 = vld [vmem:[%s76 + $0x4] sm:$0xf]
    %v79 = vld [vmem:[%s76 + $0x8] sm:$0xf]
    %v80 = vld [vmem:[%s76 + $0xc] sm:$0xf]
    %v81 = vld [vmem:[%s76 + $0x10] sm:$0xf]
    %v82 = vld [vmem:[%s76 + $0x14] sm:$0xf]
    %v83 = vld [vmem:[%s76 + $0x18] sm:$0xf]
    %v84 = vld [vmem:[%s76 + $0x1c] sm:$0xf]
    %v85 = vld [vmem:[%s76 + $0x20] sm:$0xf]
    %v86 = vld [vmem:[%s76 + $0x24] sm:$0xf]
    %v87 = vld [vmem:[%s76 + $0x28] sm:$0xf]
    %v88 = vld [vmem:[%s76 + $0x2c] sm:$0xf]
    %v89 = vld [vmem:[%s76 + $0x30] sm:$0xf]
    %v90 = vld [vmem:[%s76 + $0x34] sm:$0xf]
    %v91 = vld [vmem:[%s76 + $0x38] sm:$0xf]
    %v92 = vld [vmem:[%s76 + $0x3c] sm:$0xf]
    %s93 = scalar_lea.vmem [#allocation5], 128
    %v94 = vld [vmem:[%s93] sm:$0xf]
    %v95 = vld [vmem:[%s93 + $0x4] sm:$0xf]
    %v96 = vld [vmem:[%s93 + $0x8] sm:$0xf]
    %v97 = vld [vmem:[%s93 + $0xc] sm:$0xf]
    %v98 = vld [vmem:[%s93 + $0x10] sm:$0xf]
    %v99 = vld [vmem:[%s93 + $0x14] sm:$0xf]
    %v100 = vld [vmem:[%s93 + $0x18] sm:$0xf]
    %v101 = vld [vmem:[%s93 + $0x1c] sm:$0xf]
    %v102 = vld [vmem:[%s93 + $0x20] sm:$0xf]
    %v103 = vld [vmem:[%s93 + $0x24] sm:$0xf]
    %v104 = vld [vmem:[%s93 + $0x28] sm:$0xf]
    %v105 = vld [vmem:[%s93 + $0x2c] sm:$0xf]
    %v106 = vld [vmem:[%s93 + $0x30] sm:$0xf]
    %v107 = vld [vmem:[%s93 + $0x34] sm:$0xf]
    %v108 = vld [vmem:[%s93 + $0x38] sm:$0xf]
    %v109 = vld [vmem:[%s93 + $0x3c] sm:$0xf]
    %s110 = scalar_lea.vmem [#allocation5], 192
    %v111 = vld [vmem:[%s110] sm:$0xf]
    %v112 = vld [vmem:[%s110 + $0x4] sm:$0xf]
    %v113 = vld [vmem:[%s110 + $0x8] sm:$0xf]
    %v114 = vld [vmem:[%s110 + $0xc] sm:$0xf]
    %v115 = vld [vmem:[%s110 + $0x10] sm:$0xf]
    %v116 = vld [vmem:[%s110 + $0x14] sm:$0xf]
    %v117 = vld [vmem:[%s110 + $0x18] sm:$0xf]
    %v118 = vld [vmem:[%s110 + $0x1c] sm:$0xf]
    %v119 = vld [vmem:[%s110 + $0x20] sm:$0xf]
    %v120 = vld [vmem:[%s110 + $0x24] sm:$0xf]
    %v121 = vld [vmem:[%s110 + $0x28] sm:$0xf]
    %v122 = vld [vmem:[%s110 + $0x2c] sm:$0xf]
    %v123 = vld [vmem:[%s110 + $0x30] sm:$0xf]
    %v124 = vld [vmem:[%s110 + $0x34] sm:$0xf]
    %v125 = vld [vmem:[%s110 + $0x38] sm:$0xf]
    %v126 = vld [vmem:[%s110 + $0x3c] sm:$0xf]
    %s127 = scalar_lea.vmem [#allocation2], 64
    %v128 = vld [vmem:[%s127] sm:$0xff]
    %v129 = vld [vmem:[#allocation2] sm:$0xff]
    %v146 = vunpack.c.l.b16 %v60
    %v147 = vunpack.c.l.b16 %v61
    %v148 = vunpack.c.l.b16 %v62
    %v149 = vunpack.c.l.b16 %v63
    %v150 = vunpack.c.l.b16 %v64
    %v151 = vunpack.c.l.b16 %v65
    %v152 = vunpack.c.l.b16 %v66
    %v153 = vunpack.c.l.b16 %v67
    %v154 = vunpack.c.l.b16 %v68
    %v155 = vunpack.c.l.b16 %v69
    %v156 = vunpack.c.l.b16 %v70
    %v157 = vunpack.c.l.b16 %v71
    %v158 = vunpack.c.l.b16 %v72
    %v159 = vunpack.c.l.b16 %v73
    %v160 = vunpack.c.l.b16 %v74
    %v161 = vunpack.c.l.b16 %v75
    %v162 = vpack.c.b16 %v147, %v146
    %v163 = vpack.c.b16 %v149, %v148
    %v164 = vpack.c.b16 %v151, %v150
    %v165 = vpack.c.b16 %v153, %v152
    %v166 = vpack.c.b16 %v155, %v154
    %v167 = vpack.c.b16 %v157, %v156
    %v168 = vpack.c.b16 %v159, %v158
    %v169 = vpack.c.b16 %v161, %v160
    %178 = vmatprep.subr.bf16.mxu0 0
    %179 = vmatpush1.bf16.msra.mxu0 %v162
    %180 = vmatprep.subr.bf16.mxu0 0
    %181 = vmatpush1.bf16.msra.mxu0 %v163
    %182 = vmatprep.subr.bf16.mxu0 0
    %183 = vmatpush1.bf16.msra.mxu0 %v164
    %184 = vmatprep.subr.bf16.mxu0 0
    %185 = vmatpush1.bf16.msra.mxu0 %v165
    %186 = vmatprep.subr.bf16.mxu0 0
    %187 = vmatpush1.bf16.msra.mxu0 %v166
    %188 = vmatprep.subr.bf16.mxu0 0
    %189 = vmatpush1.bf16.msra.mxu0 %v167
    %190 = vmatprep.subr.bf16.mxu0 0
    %191 = vmatpush1.bf16.msra.mxu0 %v168
    %192 = vmatprep.subr.bf16.mxu0 0
    %193 = vmatpush1.bf16.msra.mxu0 %v169
    %194 = vmatprep.subr.bf16.mxu0 0
    %195 = vmatpush1.bf16.msra.mxu0 0
    %196 = vmatprep.subr.bf16.mxu0 0
    %197 = vmatpush1.bf16.msra.mxu0 0
    %198 = vmatprep.subr.bf16.mxu0 0
    %199 = vmatpush1.bf16.msra.mxu0 0
    %200 = vmatprep.subr.bf16.mxu0 0
    %201 = vmatpush1.bf16.msra.mxu0 0
    %202 = vmatprep.subr.bf16.mxu0 0
    %203 = vmatpush1.bf16.msra.mxu0 0
    %204 = vmatprep.subr.bf16.mxu0 0
    %205 = vmatpush1.bf16.msra.mxu0 0
    %206 = vmatprep.subr.bf16.mxu0 0
    %207 = vmatpush1.bf16.msra.mxu0 0
    %208 = vmatprep.subr.bf16.mxu0 0
    %209 = vmatpush1.bf16.msra.mxu0 0
    %210 = vmatprep.mubr.bf16.mxu0 0
    %211 = vmatmul.mubr.bf16.gmra.mrb[0].mxu0 0
    %v212 = vpop.f32.mrb[0].mxu0
    %v213 = vadd.f32 %v129, %v212
    %v214 = vpop.f32.mrb[0].mxu0
    %v215 = vpop.f32.mrb[0].mxu0
    %v216 = vpop.f32.mrb[0].mxu0
    %217 = vdwg.mxu0
    %v218 = vxor.u32 %v213, 2147483648
    %v219 = vmul.f32 %v218, 1.442695
    %v220 = vpow.pop %v219
    %v221 = vadd.f32 %v220, 1.0
    %v222 = vrcp.pop %v221
    %v223 = vmul.f32 1.0, %v222
    %v224 = vmul.f32 %v223, %v48
    %v225 = vadd.f32 %v224, %v53
    %226 = vrot.lane.b32.xlu0 %v225, 96
    %v227 = vpop.permute.xlu0 %226
    %228 = vrot.lane.b32.xlu0 %v225, 64
    %v229 = vpop.permute.xlu0 %228
    %230 = vrot.lane.b32.xlu0 %v225, 32
    %v231 = vpop.permute.xlu0 %230
    %v232 = vmul.f32 %v227, 0.0
    %v233 = vmul.f32 %v225, %v229
    %v234 = vadd.f32 %v232, %v233
    %v235 = vtanh.pop %v234
    %v236 = vmul.f32 %v231, %v235
    %v237 = vmul.f32 %v128, %v236
    %v238 = vadd.f32 %v237, 0.0
    %v239 = vmul.f32 %v128, %v234
    %v240 = vadd.f32 %v239, 0.0
    %v241 = vpack.c.bf16 %v238, %v238
    %v258 = vunpack.c.l.b16 %v77
    %v259 = vunpack.c.l.b16 %v78
    %v260 = vunpack.c.l.b16 %v79
    %v261 = vunpack.c.l.b16 %v80
    %v262 = vunpack.c.l.b16 %v81
    %v263 = vunpack.c.l.b16 %v82
    %v264 = vunpack.c.l.b16 %v83
    %v265 = vunpack.c.l.b16 %v84
    %v266 = vunpack.c.l.b16 %v85
    %v267 = vunpack.c.l.b16 %v86
    %v268 = vunpack.c.l.b16 %v87
    %v269 = vunpack.c.l.b16 %v88
    %v270 = vunpack.c.l.b16 %v89
    %v271 = vunpack.c.l.b16 %v90
    %v272 = vunpack.c.l.b16 %v91
    %v273 = vunpack.c.l.b16 %v92
    %v274 = vpack.c.b16 %v259, %v258
    %v275 = vpack.c.b16 %v261, %v260
    %v276 = vpack.c.b16 %v263, %v262
    %v277 = vpack.c.b16 %v265, %v264
    %v278 = vpack.c.b16 %v267, %v266
    %v279 = vpack.c.b16 %v269, %v268
    %v280 = vpack.c.b16 %v271, %v270
    %v281 = vpack.c.b16 %v273, %v272
    %290 = vmatprep.subr.bf16.mxu0 0
    %291 = vmatpush1.bf16.msra.mxu0 %v274
    %292 = vmatprep.subr.bf16.mxu0 0
    %293 = vmatpush1.bf16.msra.mxu0 %v275
    %294 = vmatprep.subr.bf16.mxu0 0
    %295 = vmatpush1.bf16.msra.mxu0 %v276
    %296 = vmatprep.subr.bf16.mxu0 0
    %297 = vmatpush1.bf16.msra.mxu0 %v277
    %298 = vmatprep.subr.bf16.mxu0 0
    %299 = vmatpush1.bf16.msra.mxu0 %v278
    %300 = vmatprep.subr.bf16.mxu0 0
    %301 = vmatpush1.bf16.msra.mxu0 %v279
    %302 = vmatprep.subr.bf16.mxu0 0
    %303 = vmatpush1.bf16.msra.mxu0 %v280
    %304 = vmatprep.subr.bf16.mxu0 0
    %305 = vmatpush1.bf16.msra.mxu0 %v281
    %306 = vmatprep.subr.bf16.mxu0 0
    %307 = vmatpush1.bf16.msra.mxu0 0
    %308 = vmatprep.subr.bf16.mxu0 0
    %309 = vmatpush1.bf16.msra.mxu0 0
    %310 = vmatprep.subr.bf16.mxu0 0
    %311 = vmatpush1.bf16.msra.mxu0 0
    %312 = vmatprep.subr.bf16.mxu0 0
    %313 = vmatpush1.bf16.msra.mxu0 0
    %314 = vmatprep.subr.bf16.mxu0 0
    %315 = vmatpush1.bf16.msra.mxu0 0
    %316 = vmatprep.subr.bf16.mxu0 0
    %317 = vmatpush1.bf16.msra.mxu0 0
    %318 = vmatprep.subr.bf16.mxu0 0
    %319 = vmatpush1.bf16.msra.mxu0 0
    %320 = vmatprep.subr.bf16.mxu0 0
    %321 = vmatpush1.bf16.msra.mxu0 0
    %322 = vmatprep.mubr.bf16.mxu0 0
    %323 = vmatmul.mubr.bf16.gmra.mrb[0].mxu0 0
    %v324 = vpop.f32.mrb[0].mxu0
    %v325 = vadd.f32 0.0, %v324
    %v326 = vpop.f32.mrb[0].mxu0
    %v327 = vpop.f32.mrb[0].mxu0
    %v328 = vpop.f32.mrb[0].mxu0
    %329 = vdwg.mxu0
    %v346 = vunpack.c.l.b16 %v94
    %v347 = vunpack.c.l.b16 %v95
    %v348 = vunpack.c.l.b16 %v96
    %v349 = vunpack.c.l.b16 %v97
    %v350 = vunpack.c.l.b16 %v98
    %v351 = vunpack.c.l.b16 %v99
    %v352 = vunpack.c.l.b16 %v100
    %v353 = vunpack.c.l.b16 %v101
    %v354 = vunpack.c.l.b16 %v102
    %v355 = vunpack.c.l.b16 %v103
    %v356 = vunpack.c.l.b16 %v104
    %v357 = vunpack.c.l.b16 %v105
    %v358 = vunpack.c.l.b16 %v106
    %v359 = vunpack.c.l.b16 %v107
    %v360 = vunpack.c.l.b16 %v108
    %v361 = vunpack.c.l.b16 %v109
    %v362 = vpack.c.b16 %v347, %v346
    %v363 = vpack.c.b16 %v349, %v348
    %v364 = vpack.c.b16 %v351, %v350
    %v365 = vpack.c.b16 %v353, %v352
    %v366 = vpack.c.b16 %v355, %v354
    %v367 = vpack.c.b16 %v357, %v356
    %v368 = vpack.c.b16 %v359, %v358
    %v369 = vpack.c.b16 %v361, %v360
    %378 = vmatprep.subr.bf16.mxu0 0
    %379 = vmatpush1.bf16.msra.mxu0 %v362
    %380 = vmatprep.subr.bf16.mxu0 0
    %381 = vmatpush1.bf16.msra.mxu0 %v363
    %382 = vmatprep.subr.bf16.mxu0 0
    %383 = vmatpush1.bf16.msra.mxu0 %v364
    %384 = vmatprep.subr.bf16.mxu0 0
    %385 = vmatpush1.bf16.msra.mxu0 %v365
    %386 = vmatprep.subr.bf16.mxu0 0
    %387 = vmatpush1.bf16.msra.mxu0 %v366
    %388 = vmatprep.subr.bf16.mxu0 0
    %389 = vmatpush1.bf16.msra.mxu0 %v367
    %390 = vmatprep.subr.bf16.mxu0 0
    %391 = vmatpush1.bf16.msra.mxu0 %v368
    %392 = vmatprep.subr.bf16.mxu0 0
    %393 = vmatpush1.bf16.msra.mxu0 %v369
    %394 = vmatprep.subr.bf16.mxu0 0
    %395 = vmatpush1.bf16.msra.mxu0 0
    %396 = vmatprep.subr.bf16.mxu0 0
    %397 = vmatpush1.bf16.msra.mxu0 0
    %398 = vmatprep.subr.bf16.mxu0 0
    %399 = vmatpush1.bf16.msra.mxu0 0
    %400 = vmatprep.subr.bf16.mxu0 0
    %401 = vmatpush1.bf16.msra.mxu0 0
    %402 = vmatprep.subr.bf16.mxu0 0
    %403 = vmatpush1.bf16.msra.mxu0 0
    %404 = vmatprep.subr.bf16.mxu0 0
    %405 = vmatpush1.bf16.msra.mxu0 0
    %406 = vmatprep.subr.bf16.mxu0 0
    %407 = vmatpush1.bf16.msra.mxu0 0
    %408 = vmatprep.subr.bf16.mxu0 0
    %409 = vmatpush1.bf16.msra.mxu0 0
    %410 = vmatprep.mubr.bf16.mxu0 0
    %411 = vmatmul.mubr.bf16.gmra.mrb[0].mxu0 %v241
    %v412 = vpop.f32.mrb[0].mxu0
    %v413 = vadd.f32 %v325, %v412
    %v414 = vpop.f32.mrb[0].mxu0
    %v415 = vpop.f32.mrb[0].mxu0
    %v416 = vpop.f32.mrb[0].mxu0
    %417 = vdwg.mxu0
    %v418 = vadd.f32 %v413, %v58
    %v419 = vxor.u32 %v418, 2147483648
    %v420 = vmul.f32 %v419, 1.442695
    %v421 = vpow.pop %v420
    %v422 = vadd.f32 %v421, 1.0
    %v423 = vrcp.pop %v422
    %v424 = vmul.f32 1.0, %v423
    %v425 = vmul.f32 %v424, %v48
    %v426 = vadd.f32 %v425, %v53
    %427 = vrot.lane.b32.xlu0 %v426, 96
    %v428 = vpop.permute.xlu0 %427
    %429 = vrot.lane.b32.xlu0 %v426, 64
    %v430 = vpop.permute.xlu0 %429
    %431 = vrot.lane.b32.xlu0 %v426, 32
    %v432 = vpop.permute.xlu0 %431
    %v433 = vmul.f32 %v428, 0.0
    %v434 = vmul.f32 %v426, %v430
    %v435 = vadd.f32 %v433, %v434
    %v436 = vtanh.pop %v435
    %v437 = vmul.f32 %v432, %v436
    %v438 = vmul.f32 %v128, %v437
    %v439 = vadd.f32 %v438, 0.0
    %v440 = vmul.f32 %v128, %v435
    %v441 = vadd.f32 %v440, 0.0
    %s442 = scalar_lea.vmem [#allocation2], 72
    %v443 = vld [vmem:[%s442] sm:$0xff]
    %s444 = scalar_lea.vmem [#allocation2], 8
    %v445 = vld [vmem:[%s444] sm:$0xff]
    %446 = vmatprep.subr.bf16.mxu0 0
    %447 = vmatpush1.bf16.msra.mxu0 %v162
    %448 = vmatprep.subr.bf16.mxu0 0
    %449 = vmatpush1.bf16.msra.mxu0 %v163
    %450 = vmatprep.subr.bf16.mxu0 0
    %451 = vmatpush1.bf16.msra.mxu0 %v164
    %452 = vmatprep.subr.bf16.mxu0 0
    %453 = vmatpush1.bf16.msra.mxu0 %v165
    %454 = vmatprep.subr.bf16.mxu0 0
    %455 = vmatpush1.bf16.msra.mxu0 %v166
    %456 = vmatprep.subr.bf16.mxu0 0
    %457 = vmatpush1.bf16.msra.mxu0 %v167
    %458 = vmatprep.subr.bf16.mxu0 0
    %459 = vmatpush1.bf16.msra.mxu0 %v168
    %460 = vmatprep.subr.bf16.mxu0 0
    %461 = vmatpush1.bf16.msra.mxu0 %v169
    %462 = vmatprep.subr.bf16.mxu0 0
    %463 = vmatpush1.bf16.msra.mxu0 0
    %464 = vmatprep.subr.bf16.mxu0 0
    %465 = vmatpush1.bf16.msra.mxu0 0
    %466 = vmatprep.subr.bf16.mxu0 0
    %467 = vmatpush1.bf16.msra.mxu0 0
    %468 = vmatprep.subr.bf16.mxu0 0
    %469 = vmatpush1.bf16.msra.mxu0 0
    %470 = vmatprep.subr.bf16.mxu0 0
    %471 = vmatpush1.bf16.msra.mxu0 0
    %472 = vmatprep.subr.bf16.mxu0 0
    %473 = vmatpush1.bf16.msra.mxu0 0
    %474 = vmatprep.subr.bf16.mxu0 0
    %475 = vmatpush1.bf16.msra.mxu0 0
    %476 = vmatprep.subr.bf16.mxu0 0
    %477 = vmatpush1.bf16.msra.mxu0 0
    %478 = vmatprep.mubr.bf16.mxu0 0
    %479 = vmatmul.mubr.bf16.gmra.mrb[0].mxu0 %v241
    %v480 = vpop.f32.mrb[0].mxu0
    %v481 = vadd.f32 %v445, %v480
    %v482 = vpop.f32.mrb[0].mxu0
    %v483 = vpop.f32.mrb[0].mxu0
    %v484 = vpop.f32.mrb[0].mxu0
    %485 = vdwg.mxu0
    %v486 = vxor.u32 %v481, 2147483648
    %v487 = vmul.f32 %v486, 1.442695
    %v488 = vpow.pop %v487
    %v489 = vadd.f32 %v488, 1.0
    %v490 = vrcp.pop %v489
    %v491 = vmul.f32 1.0, %v490
    %v492 = vmul.f32 %v491, %v48
    %v493 = vadd.f32 %v492, %v53
    %494 = vrot.lane.b32.xlu0 %v493, 96
    %v495 = vpop.permute.xlu0 %494
    %496 = vrot.lane.b32.xlu0 %v493, 64
    %v497 = vpop.permute.xlu0 %496
    %498 = vrot.lane.b32.xlu0 %v493, 32
    %v499 = vpop.permute.xlu0 %498
    %v500 = vmul.f32 %v495, %v240
    %v501 = vmul.f32 %v493, %v497
    %v502 = vadd.f32 %v500, %v501
    %v503 = vtanh.pop %v502
    %v504 = vmul.f32 %v499, %v503
    %v505 = vsub.f32 %v504, %v238
    %v506 = vmul.f32 %v443, %v505
    %v507 = vadd.f32 %v238, %v506
    %v508 = vsub.f32 %v502, %v240
    %v509 = vmul.f32 %v443, %v508
    %v510 = vadd.f32 %v240, %v509
    %v511 = vpack.c.bf16 %v507, %v507
    %v512 = vpack.c.bf16 %v439, %v439
    %513 = vmatprep.subr.bf16.mxu0 0
    %514 = vmatpush1.bf16.msra.mxu0 %v274
    %515 = vmatprep.subr.bf16.mxu0 0
    %516 = vmatpush1.bf16.msra.mxu0 %v275
    %517 = vmatprep.subr.bf16.mxu0 0
    %518 = vmatpush1.bf16.msra.mxu0 %v276
    %519 = vmatprep.subr.bf16.mxu0 0
    %520 = vmatpush1.bf16.msra.mxu0 %v277
    %521 = vmatprep.subr.bf16.mxu0 0
    %522 = vmatpush1.bf16.msra.mxu0 %v278
    %523 = vmatprep.subr.bf16.mxu0 0
    %524 = vmatpush1.bf16.msra.mxu0 %v279
    %525 = vmatprep.subr.bf16.mxu0 0
    %526 = vmatpush1.bf16.msra.mxu0 %v280
    %527 = vmatprep.subr.bf16.mxu0 0
    %528 = vmatpush1.bf16.msra.mxu0 %v281
    %529 = vmatprep.subr.bf16.mxu0 0
    %530 = vmatpush1.bf16.msra.mxu0 0
    %531 = vmatprep.subr.bf16.mxu0 0
    %532 = vmatpush1.bf16.msra.mxu0 0
    %533 = vmatprep.subr.bf16.mxu0 0
    %534 = vmatpush1.bf16.msra.mxu0 0
    %535 = vmatprep.subr.bf16.mxu0 0
    %536 = vmatpush1.bf16.msra.mxu0 0
    %537 = vmatprep.subr.bf16.mxu0 0
    %538 = vmatpush1.bf16.msra.mxu0 0
    %539 = vmatprep.subr.bf16.mxu0 0
    %540 = vmatpush1.bf16.msra.mxu0 0
    %541 = vmatprep.subr.bf16.mxu0 0
    %542 = vmatpush1.bf16.msra.mxu0 0
    %543 = vmatprep.subr.bf16.mxu0 0
    %544 = vmatpush1.bf16.msra.mxu0 0
    %545 = vmatprep.mubr.bf16.mxu0 0
    %546 = vmatmul.mubr.bf16.gmra.mrb[0].mxu0 %v512
    %v547 = vpop.f32.mrb[0].mxu0
    %v548 = vadd.f32 0.0, %v547
    %v549 = vpop.f32.mrb[0].mxu0
    %v550 = vpop.f32.mrb[0].mxu0
    %v551 = vpop.f32.mrb[0].mxu0
    %552 = vdwg.mxu0
    %553 = vmatprep.subr.bf16.mxu0 0
    %554 = vmatpush1.bf16.msra.mxu0 %v362
    %555 = vmatprep.subr.bf16.mxu0 0
    %556 = vmatpush1.bf16.msra.mxu0 %v363
    %557 = vmatprep.subr.bf16.mxu0 0
    %558 = vmatpush1.bf16.msra.mxu0 %v364
    %559 = vmatprep.subr.bf16.mxu0 0
    %560 = vmatpush1.bf16.msra.mxu0 %v365
    %561 = vmatprep.subr.bf16.mxu0 0
    %562 = vmatpush1.bf16.msra.mxu0 %v366
    %563 = vmatprep.subr.bf16.mxu0 0
    %564 = vmatpush1.bf16.msra.mxu0 %v367
    %565 = vmatprep.subr.bf16.mxu0 0
    %566 = vmatpush1.bf16.msra.mxu0 %v368
    %567 = vmatprep.subr.bf16.mxu0 0
    %568 = vmatpush1.bf16.msra.mxu0 %v369
    %569 = vmatprep.subr.bf16.mxu0 0
    %570 = vmatpush1.bf16.msra.mxu0 0
    %571 = vmatprep.subr.bf16.mxu0 0
    %572 = vmatpush1.bf16.msra.mxu0 0
    %573 = vmatprep.subr.bf16.mxu0 0
    %574 = vmatpush1.bf16.msra.mxu0 0
    %575 = vmatprep.subr.bf16.mxu0 0
    %576 = vmatpush1.bf16.msra.mxu0 0
    %577 = vmatprep.subr.bf16.mxu0 0
    %578 = vmatpush1.bf16.msra.mxu0 0
    %579 = vmatprep.subr.bf16.mxu0 0
    %580 = vmatpush1.bf16.msra.mxu0 0
    %581 = vmatprep.subr.bf16.mxu0 0
    %582 = vmatpush1.bf16.msra.mxu0 0
    %583 = vmatprep.subr.bf16.mxu0 0
    %584 = vmatpush1.bf16.msra.mxu0 0
    %585 = vmatprep.mubr.bf16.mxu0 0
    %586 = vmatmul.mubr.bf16.gmra.mrb[0].mxu0 %v511
    %v587 = vpop.f32.mrb[0].mxu0
    %v588 = vadd.f32 %v548, %v587
    %v589 = vpop.f32.mrb[0].mxu0
    %v590 = vpop.f32.mrb[0].mxu0
    %v591 = vpop.f32.mrb[0].mxu0
    %592 = vdwg.mxu0
    %v593 = vadd.f32 %v588, %v58
    %v594 = vxor.u32 %v593, 2147483648
    %v595 = vmul.f32 %v594, 1.442695
    %v596 = vpow.pop %v595
    %v597 = vadd.f32 %v596, 1.0
    %v598 = vrcp.pop %v597
    %v599 = vmul.f32 1.0, %v598
    %v600 = vmul.f32 %v599, %v48
    %v601 = vadd.f32 %v600, %v53
    %602 = vrot.lane.b32.xlu0 %v601, 96
    %v603 = vpop.permute.xlu0 %602
    %604 = vrot.lane.b32.xlu0 %v601, 64
    %v605 = vpop.permute.xlu0 %604
    %606 = vrot.lane.b32.xlu0 %v601, 32
    %v607 = vpop.permute.xlu0 %606
    %v608 = vmul.f32 %v603, %v441
    %v609 = vmul.f32 %v601, %v605
    %v610 = vadd.f32 %v608, %v609
    %v611 = vtanh.pop %v610
    %v612 = vmul.f32 %v607, %v611
    %v613 = vsub.f32 %v612, %v439
    %v614 = vmul.f32 %v443, %v613
    %v615 = vadd.f32 %v439, %v614
    %v616 = vsub.f32 %v610, %v441
    %v617 = vmul.f32 %v443, %v616
    %v618 = vadd.f32 %v441, %v617
    %s619 = scalar_lea.vmem [#allocation2], 80
    %v620 = vld [vmem:[%s619] sm:$0xff]
    %s621 = scalar_lea.vmem [#allocation2], 16
    %v622 = vld [vmem:[%s621] sm:$0xff]
    %623 = vmatprep.subr.bf16.mxu0 0
    %624 = vmatpush1.bf16.msra.mxu0 %v162
    %625 = vmatprep.subr.bf16.mxu0 0
    %626 = vmatpush1.bf16.msra.mxu0 %v163
    %627 = vmatprep.subr.bf16.mxu0 0
    %628 = vmatpush1.bf16.msra.mxu0 %v164
    %629 = vmatprep.subr.bf16.mxu0 0
    %630 = vmatpush1.bf16.msra.mxu0 %v165
    %631 = vmatprep.subr.bf16.mxu0 0
    %632 = vmatpush1.bf16.msra.mxu0 %v166
    %633 = vmatprep.subr.bf16.mxu0 0
    %634 = vmatpush1.bf16.msra.mxu0 %v167
    %635 = vmatprep.subr.bf16.mxu0 0
    %636 = vmatpush1.bf16.msra.mxu0 %v168
    %637 = vmatprep.subr.bf16.mxu0 0
    %638 = vmatpush1.bf16.msra.mxu0 %v169
    %639 = vmatprep.subr.bf16.mxu0 0
    %640 = vmatpush1.bf16.msra.mxu0 0
    %641 = vmatprep.subr.bf16.mxu0 0
    %642 = vmatpush1.bf16.msra.mxu0 0
    %643 = vmatprep.subr.bf16.mxu0 0
    %644 = vmatpush1.bf16.msra.mxu0 0
    %645 = vmatprep.subr.bf16.mxu0 0
    %646 = vmatpush1.bf16.msra.mxu0 0
    %647 = vmatprep.subr.bf16.mxu0 0
    %648 = vmatpush1.bf16.msra.mxu0 0
    %649 = vmatprep.subr.bf16.mxu0 0
    %650 = vmatpush1.bf16.msra.mxu0 0
    %651 = vmatprep.subr.bf16.mxu0 0
    %652 = vmatpush1.bf16.msra.mxu0 0
    %653 = vmatprep.subr.bf16.mxu0 0
    %654 = vmatpush1.bf16.msra.mxu0 0
    %655 = vmatprep.mubr.bf16.mxu0 0
    %656 = vmatmul.mubr.bf16.gmra.mrb[0].mxu0 %v511
    %v657 = vpop.f32.mrb[0].mxu0
    %v658 = vadd.f32 %v622, %v657
    %v659 = vpop.f32.mrb[0].mxu0
    %v660 = vpop.f32.mrb[0].mxu0
    %v661 = vpop.f32.mrb[0].mxu0
    %662 = vdwg.mxu0
    %v663 = vxor.u32 %v658, 2147483648
    %v664 = vmul.f32 %v663, 1.442695
    %v665 = vpow.pop %v664
    %v666 = vadd.f32 %v665, 1.0
    %v667 = vrcp.pop %v666
    %v668 = vmul.f32 1.0, %v667
    %v669 = vmul.f32 %v668, %v48
    %v670 = vadd.f32 %v669, %v53
    %671 = vrot.lane.b32.xlu0 %v670, 96
    %v672 = vpop.permute.xlu0 %671
    %673 = vrot.lane.b32.xlu0 %v670, 64
    %v674 = vpop.permute.xlu0 %673
    %675 = vrot.lane.b32.xlu0 %v670, 32
    %v676 = vpop.permute.xlu0 %675
    %v677 = vmul.f32 %v672, %v510
    %v678 = vmul.f32 %v670, %v674
    %v679 = vadd.f32 %v677, %v678
    %v680 = vtanh.pop %v679
    %v681 = vmul.f32 %v676, %v680
    %v682 = vsub.f32 %v681, %v507
    %v683 = vmul.f32 %v620, %v682
    %v684 = vadd.f32 %v507, %v683
    %v685 = vsub.f32 %v679, %v510
    %v686 = vmul.f32 %v620, %v685
    %v687 = vadd.f32 %v510, %v686
    %v688 = vpack.c.bf16 %v684, %v684
    %v689 = vpack.c.bf16 %v615, %v615
    %690 = vmatprep.subr.bf16.mxu0 0
    %691 = vmatpush1.bf16.msra.mxu0 %v274
    %692 = vmatprep.subr.bf16.mxu0 0
    %693 = vmatpush1.bf16.msra.mxu0 %v275
    %694 = vmatprep.subr.bf16.mxu0 0
    %695 = vmatpush1.bf16.msra.mxu0 %v276
    %696 = vmatprep.subr.bf16.mxu0 0
    %697 = vmatpush1.bf16.msra.mxu0 %v277
    %698 = vmatprep.subr.bf16.mxu0 0
    %699 = vmatpush1.bf16.msra.mxu0 %v278
    %700 = vmatprep.subr.bf16.mxu0 0
    %701 = vmatpush1.bf16.msra.mxu0 %v279
    %702 = vmatprep.subr.bf16.mxu0 0
    %703 = vmatpush1.bf16.msra.mxu0 %v280
    %704 = vmatprep.subr.bf16.mxu0 0
    %705 = vmatpush1.bf16.msra.mxu0 %v281
    %706 = vmatprep.subr.bf16.mxu0 0
    %707 = vmatpush1.bf16.msra.mxu0 0
    %708 = vmatprep.subr.bf16.mxu0 0
    %709 = vmatpush1.bf16.msra.mxu0 0
    %710 = vmatprep.subr.bf16.mxu0 0
    %711 = vmatpush1.bf16.msra.mxu0 0
    %712 = vmatprep.subr.bf16.mxu0 0
    %713 = vmatpush1.bf16.msra.mxu0 0
    %714 = vmatprep.subr.bf16.mxu0 0
    %715 = vmatpush1.bf16.msra.mxu0 0
    %716 = vmatprep.subr.bf16.mxu0 0
    %717 = vmatpush1.bf16.msra.mxu0 0
    %718 = vmatprep.subr.bf16.mxu0 0
    %719 = vmatpush1.bf16.msra.mxu0 0
    %720 = vmatprep.subr.bf16.mxu0 0
    %721 = vmatpush1.bf16.msra.mxu0 0
    %722 = vmatprep.mubr.bf16.mxu0 0
    %723 = vmatmul.mubr.bf16.gmra.mrb[0].mxu0 %v689
    %v724 = vpop.f32.mrb[0].mxu0
    %v725 = vadd.f32 0.0, %v724
    %v726 = vpop.f32.mrb[0].mxu0
    %v727 = vpop.f32.mrb[0].mxu0
    %v728 = vpop.f32.mrb[0].mxu0
    %729 = vdwg.mxu0
    %730 = vmatprep.subr.bf16.mxu0 0
    %731 = vmatpush1.bf16.msra.mxu0 %v362
    %732 = vmatprep.subr.bf16.mxu0 0
    %733 = vmatpush1.bf16.msra.mxu0 %v363
    %734 = vmatprep.subr.bf16.mxu0 0
    %735 = vmatpush1.bf16.msra.mxu0 %v364
    %736 = vmatprep.subr.bf16.mxu0 0
    %737 = vmatpush1.bf16.msra.mxu0 %v365
    %738 = vmatprep.subr.bf16.mxu0 0
    %739 = vmatpush1.bf16.msra.mxu0 %v366
    %740 = vmatprep.subr.bf16.mxu0 0
    %741 = vmatpush1.bf16.msra.mxu0 %v367
    %742 = vmatprep.subr.bf16.mxu0 0
    %743 = vmatpush1.bf16.msra.mxu0 %v368
    %744 = vmatprep.subr.bf16.mxu0 0
    %745 = vmatpush1.bf16.msra.mxu0 %v369
    %746 = vmatprep.subr.bf16.mxu0 0
    %747 = vmatpush1.bf16.msra.mxu0 0
    %748 = vmatprep.subr.bf16.mxu0 0
    %749 = vmatpush1.bf16.msra.mxu0 0
    %750 = vmatprep.subr.bf16.mxu0 0
    %751 = vmatpush1.bf16.msra.mxu0 0
    %752 = vmatprep.subr.bf16.mxu0 0
    %753 = vmatpush1.bf16.msra.mxu0 0
    %754 = vmatprep.subr.bf16.mxu0 0
    %755 = vmatpush1.bf16.msra.mxu0 0
    %756 = vmatprep.subr.bf16.mxu0 0
    %757 = vmatpush1.bf16.msra.mxu0 0
    %758 = vmatprep.subr.bf16.mxu0 0
    %759 = vmatpush1.bf16.msra.mxu0 0
    %760 = vmatprep.subr.bf16.mxu0 0
    %761 = vmatpush1.bf16.msra.mxu0 0
    %762 = vmatprep.mubr.bf16.mxu0 0
    %763 = vmatmul.mubr.bf16.gmra.mrb[0].mxu0 %v688
    %v764 = vpop.f32.mrb[0].mxu0
    %v765 = vadd.f32 %v725, %v764
    %v766 = vpop.f32.mrb[0].mxu0
    %v767 = vpop.f32.mrb[0].mxu0
    %v768 = vpop.f32.mrb[0].mxu0
    %769 = vdwg.mxu0
    %v770 = vadd.f32 %v765, %v58
    %v771 = vxor.u32 %v770, 2147483648
    %v772 = vmul.f32 %v771, 1.442695
    %v773 = vpow.pop %v772
    %v774 = vadd.f32 %v773, 1.0
    %v775 = vrcp.pop %v774
    %v776 = vmul.f32 1.0, %v775
    %v777 = vmul.f32 %v776, %v48
    %v778 = vadd.f32 %v777, %v53
    %779 = vrot.lane.b32.xlu0 %v778, 96
    %v780 = vpop.permute.xlu0 %779
    %781 = vrot.lane.b32.xlu0 %v778, 64
    %v782 = vpop.permute.xlu0 %781
    %783 = vrot.lane.b32.xlu0 %v778, 32
    %v784 = vpop.permute.xlu0 %783
    %v785 = vmul.f32 %v780, %v618
    %v786 = vmul.f32 %v778, %v782
    %v787 = vadd.f32 %v785, %v786
    %v788 = vtanh.pop %v787
    %v789 = vmul.f32 %v784, %v788
    %v790 = vsub.f32 %v789, %v615
    %v791 = vmul.f32 %v620, %v790
    %v792 = vadd.f32 %v615, %v791
    %v793 = vsub.f32 %v787, %v618
    %v794 = vmul.f32 %v620, %v793
    %v795 = vadd.f32 %v618, %v794
    %s796 = scalar_lea.vmem [#allocation2], 88
    %v797 = vld [vmem:[%s796] sm:$0xff]
    %s798 = scalar_lea.vmem [#allocation2], 24
    %v799 = vld [vmem:[%s798] sm:$0xff]
    %800 = vmatprep.subr.bf16.mxu0 0
    %801 = vmatpush1.bf16.msra.mxu0 %v162
    %802 = vmatprep.subr.bf16.mxu0 0
    %803 = vmatpush1.bf16.msra.mxu0 %v163
    %804 = vmatprep.subr.bf16.mxu0 0
    %805 = vmatpush1.bf16.msra.mxu0 %v164
    %806 = vmatprep.subr.bf16.mxu0 0
    %807 = vmatpush1.bf16.msra.mxu0 %v165
    %808 = vmatprep.subr.bf16.mxu0 0
    %809 = vmatpush1.bf16.msra.mxu0 %v166
    %810 = vmatprep.subr.bf16.mxu0 0
    %811 = vmatpush1.bf16.msra.mxu0 %v167
    %812 = vmatprep.subr.bf16.mxu0 0
    %813 = vmatpush1.bf16.msra.mxu0 %v168
    %814 = vmatprep.subr.bf16.mxu0 0
    %815 = vmatpush1.bf16.msra.mxu0 %v169
    %816 = vmatprep.subr.bf16.mxu0 0
    %817 = vmatpush1.bf16.msra.mxu0 0
    %818 = vmatprep.subr.bf16.mxu0 0
    %819 = vmatpush1.bf16.msra.mxu0 0
    %820 = vmatprep.subr.bf16.mxu0 0
    %821 = vmatpush1.bf16.msra.mxu0 0
    %822 = vmatprep.subr.bf16.mxu0 0
    %823 = vmatpush1.bf16.msra.mxu0 0
    %824 = vmatprep.subr.bf16.mxu0 0
    %825 = vmatpush1.bf16.msra.mxu0 0
    %826 = vmatprep.subr.bf16.mxu0 0
    %827 = vmatpush1.bf16.msra.mxu0 0
    %828 = vmatprep.subr.bf16.mxu0 0
    %829 = vmatpush1.bf16.msra.mxu0 0
    %830 = vmatprep.subr.bf16.mxu0 0
    %831 = vmatpush1.bf16.msra.mxu0 0
    %832 = vmatprep.mubr.bf16.mxu0 0
    %833 = vmatmul.mubr.bf16.gmra.mrb[0].mxu0 %v688
    %v834 = vpop.f32.mrb[0].mxu0
    %v835 = vadd.f32 %v799, %v834
    %v836 = vpop.f32.mrb[0].mxu0
    %v837 = vpop.f32.mrb[0].mxu0
    %v838 = vpop.f32.mrb[0].mxu0
    %839 = vdwg.mxu0
    %v840 = vxor.u32 %v835, 2147483648
    %v841 = vmul.f32 %v840, 1.442695
    %v842 = vpow.pop %v841
    %v843 = vadd.f32 %v842, 1.0
    %v844 = vrcp.pop %v843
    %v845 = vmul.f32 1.0, %v844
    %v846 = vmul.f32 %v845, %v48
    %v847 = vadd.f32 %v846, %v53
    %848 = vrot.lane.b32.xlu0 %v847, 96
    %v849 = vpop.permute.xlu0 %848
    %850 = vrot.lane.b32.xlu0 %v847, 64
    %v851 = vpop.permute.xlu0 %850
    %852 = vrot.lane.b32.xlu0 %v847, 32
    %v853 = vpop.permute.xlu0 %852
    %v854 = vmul.f32 %v849, %v687
    %v855 = vmul.f32 %v847, %v851
    %v856 = vadd.f32 %v854, %v855
    %v857 = vtanh.pop %v856
    %v858 = vmul.f32 %v853, %v857
    %v859 = vsub.f32 %v858, %v684
    %v860 = vmul.f32 %v797, %v859
    %v861 = vadd.f32 %v684, %v860
    %v862 = vsub.f32 %v856, %v687
    %v863 = vmul.f32 %v797, %v862
    %v864 = vadd.f32 %v687, %v863
    %v865 = vpack.c.bf16 %v861, %v861
    %v866 = vpack.c.bf16 %v792, %v792
    %867 = vmatprep.subr.bf16.mxu0 0
    %868 = vmatpush1.bf16.msra.mxu0 %v274
    %869 = vmatprep.subr.bf16.mxu0 0
    %870 = vmatpush1.bf16.msra.mxu0 %v275
    %871 = vmatprep.subr.bf16.mxu0 0
    %872 = vmatpush1.bf16.msra.mxu0 %v276
    %873 = vmatprep.subr.bf16.mxu0 0
    %874 = vmatpush1.bf16.msra.mxu0 %v277
    %875 = vmatprep.subr.bf16.mxu0 0
    %876 = vmatpush1.bf16.msra.mxu0 %v278
    %877 = vmatprep.subr.bf16.mxu0 0
    %878 = vmatpush1.bf16.msra.mxu0 %v279
    %879 = vmatprep.subr.bf16.mxu0 0
    %880 = vmatpush1.bf16.msra.mxu0 %v280
    %881 = vmatprep.subr.bf16.mxu0 0
    %882 = vmatpush1.bf16.msra.mxu0 %v281
    %883 = vmatprep.subr.bf16.mxu0 0
    %884 = vmatpush1.bf16.msra.mxu0 0
    %885 = vmatprep.subr.bf16.mxu0 0
    %886 = vmatpush1.bf16.msra.mxu0 0
    %887 = vmatprep.subr.bf16.mxu0 0
    %888 = vmatpush1.bf16.msra.mxu0 0
    %889 = vmatprep.subr.bf16.mxu0 0
    %890 = vmatpush1.bf16.msra.mxu0 0
    %891 = vmatprep.subr.bf16.mxu0 0
    %892 = vmatpush1.bf16.msra.mxu0 0
    %893 = vmatprep.subr.bf16.mxu0 0
    %894 = vmatpush1.bf16.msra.mxu0 0
    %895 = vmatprep.subr.bf16.mxu0 0
    %896 = vmatpush1.bf16.msra.mxu0 0
    %897 = vmatprep.subr.bf16.mxu0 0
    %898 = vmatpush1.bf16.msra.mxu0 0
    %899 = vmatprep.mubr.bf16.mxu0 0
    %900 = vmatmul.mubr.bf16.gmra.mrb[0].mxu0 %v866
    %v901 = vpop.f32.mrb[0].mxu0
    %v902 = vadd.f32 0.0, %v901
    %v903 = vpop.f32.mrb[0].mxu0
    %v904 = vpop.f32.mrb[0].mxu0
    %v905 = vpop.f32.mrb[0].mxu0
    %906 = vdwg.mxu0
    %907 = vmatprep.subr.bf16.mxu0 0
    %908 = vmatpush1.bf16.msra.mxu0 %v362
    %909 = vmatprep.subr.bf16.mxu0 0
    %910 = vmatpush1.bf16.msra.mxu0 %v363
    %911 = vmatprep.subr.bf16.mxu0 0
    %912 = vmatpush1.bf16.msra.mxu0 %v364
    %913 = vmatprep.subr.bf16.mxu0 0
    %914 = vmatpush1.bf16.msra.mxu0 %v365
    %915 = vmatprep.subr.bf16.mxu0 0
    %916 = vmatpush1.bf16.msra.mxu0 %v366
    %917 = vmatprep.subr.bf16.mxu0 0
    %918 = vmatpush1.bf16.msra.mxu0 %v367
    %919 = vmatprep.subr.bf16.mxu0 0
    %920 = vmatpush1.bf16.msra.mxu0 %v368
    %921 = vmatprep.subr.bf16.mxu0 0
    %922 = vmatpush1.bf16.msra.mxu0 %v369
    %923 = vmatprep.subr.bf16.mxu0 0
    %924 = vmatpush1.bf16.msra.mxu0 0
    %925 = vmatprep.subr.bf16.mxu0 0
    %926 = vmatpush1.bf16.msra.mxu0 0
    %927 = vmatprep.subr.bf16.mxu0 0
    %928 = vmatpush1.bf16.msra.mxu0 0
    %929 = vmatprep.subr.bf16.mxu0 0
    %930 = vmatpush1.bf16.msra.mxu0 0
    %931 = vmatprep.subr.bf16.mxu0 0
    %932 = vmatpush1.bf16.msra.mxu0 0
    %933 = vmatprep.subr.bf16.mxu0 0
    %934 = vmatpush1.bf16.msra.mxu0 0
    %935 = vmatprep.subr.bf16.mxu0 0
    %936 = vmatpush1.bf16.msra.mxu0 0
    %937 = vmatprep.subr.bf16.mxu0 0
    %938 = vmatpush1.bf16.msra.mxu0 0
    %939 = vmatprep.mubr.bf16.mxu0 0
    %940 = vmatmul.mubr.bf16.gmra.mrb[0].mxu0 %v865
    %v941 = vpop.f32.mrb[0].mxu0
    %v942 = vadd.f32 %v902, %v941
    %v943 = vpop.f32.mrb[0].mxu0
    %v944 = vpop.f32.mrb[0].mxu0
    %v945 = vpop.f32.mrb[0].mxu0
    %946 = vdwg.mxu0
    %v947 = vadd.f32 %v942, %v58
    %v948 = vxor.u32 %v947, 2147483648
    %v949 = vmul.f32 %v948, 1.442695
    %v950 = vpow.pop %v949
    %v951 = vadd.f32 %v950, 1.0
    %v952 = vrcp.pop %v951
    %v953 = vmul.f32 1.0, %v952
    %v954 = vmul.f32 %v953, %v48
    %v955 = vadd.f32 %v954, %v53
    %956 = vrot.lane.b32.xlu0 %v955, 96
    %v957 = vpop.permute.xlu0 %956
    %958 = vrot.lane.b32.xlu0 %v955, 64
    %v959 = vpop.permute.xlu0 %958
    %960 = vrot.lane.b32.xlu0 %v955, 32
    %v961 = vpop.permute.xlu0 %960
    %v962 = vmul.f32 %v957, %v795
    %v963 = vmul.f32 %v955, %v959
    %v964 = vadd.f32 %v962, %v963
    %v965 = vtanh.pop %v964
    %v966 = vmul.f32 %v961, %v965
    %v967 = vsub.f32 %v966, %v792
    %v968 = vmul.f32 %v797, %v967
    %v969 = vadd.f32 %v792, %v968
    %v970 = vsub.f32 %v964, %v795
    %v971 = vmul.f32 %v797, %v970
    %v972 = vadd.f32 %v795, %v971
    %s973 = scalar_lea.vmem [#allocation2], 96
    %v974 = vld [vmem:[%s973] sm:$0xff]
    %s975 = scalar_lea.vmem [#allocation2], 32
    %v976 = vld [vmem:[%s975] sm:$0xff]
    %977 = vmatprep.subr.bf16.mxu0 0
    %978 = vmatpush1.bf16.msra.mxu0 %v162
    %979 = vmatprep.subr.bf16.mxu0 0
    %980 = vmatpush1.bf16.msra.mxu0 %v163
    %981 = vmatprep.subr.bf16.mxu0 0
    %982 = vmatpush1.bf16.msra.mxu0 %v164
    %983 = vmatprep.subr.bf16.mxu0 0
    %984 = vmatpush1.bf16.msra.mxu0 %v165
    %985 = vmatprep.subr.bf16.mxu0 0
    %986 = vmatpush1.bf16.msra.mxu0 %v166
    %987 = vmatprep.subr.bf16.mxu0 0
    %988 = vmatpush1.bf16.msra.mxu0 %v167
    %989 = vmatprep.subr.bf16.mxu0 0
    %990 = vmatpush1.bf16.msra.mxu0 %v168
    %991 = vmatprep.subr.bf16.mxu0 0
    %992 = vmatpush1.bf16.msra.mxu0 %v169
    %993 = vmatprep.subr.bf16.mxu0 0
    %994 = vmatpush1.bf16.msra.mxu0 0
    %995 = vmatprep.subr.bf16.mxu0 0
    %996 = vmatpush1.bf16.msra.mxu0 0
    %997 = vmatprep.subr.bf16.mxu0 0
    %998 = vmatpush1.bf16.msra.mxu0 0
    %999 = vmatprep.subr.bf16.mxu0 0
    %1000 = vmatpush1.bf16.msra.mxu0 0
    %1001 = vmatprep.subr.bf16.mxu0 0
    %1002 = vmatpush1.bf16.msra.mxu0 0
    %1003 = vmatprep.subr.bf16.mxu0 0
    %1004 = vmatpush1.bf16.msra.mxu0 0
    %1005 = vmatprep.subr.bf16.mxu0 0
    %1006 = vmatpush1.bf16.msra.mxu0 0
    %1007 = vmatprep.subr.bf16.mxu0 0
    %1008 = vmatpush1.bf16.msra.mxu0 0
    %1009 = vmatprep.mubr.bf16.mxu0 0
    %1010 = vmatmul.mubr.bf16.gmra.mrb[0].mxu0 %v865
    %v1011 = vpop.f32.mrb[0].mxu0
    %v1012 = vadd.f32 %v976, %v1011
    %v1013 = vpop.f32.mrb[0].mxu0
    %v1014 = vpop.f32.mrb[0].mxu0
    %v1015 = vpop.f32.mrb[0].mxu0
    %1016 = vdwg.mxu0
    %v1017 = vxor.u32 %v1012, 2147483648
    %v1018 = vmul.f32 %v1017, 1.442695
    %v1019 = vpow.pop %v1018
    %v1020 = vadd.f32 %v1019, 1.0
    %v1021 = vrcp.pop %v1020
    %v1022 = vmul.f32 1.0, %v1021
    %v1023 = vmul.f32 %v1022, %v48
    %v1024 = vadd.f32 %v1023, %v53
    %1025 = vrot.lane.b32.xlu0 %v1024, 96
    %v1026 = vpop.permute.xlu0 %1025
    %1027 = vrot.lane.b32.xlu0 %v1024, 64
    %v1028 = vpop.permute.xlu0 %1027
    %1029 = vrot.lane.b32.xlu0 %v1024, 32
    %v1030 = vpop.permute.xlu0 %1029
    %v1031 = vmul.f32 %v1026, %v864
    %v1032 = vmul.f32 %v1024, %v1028
    %v1033 = vadd.f32 %v1031, %v1032
    %v1034 = vtanh.pop %v1033
    %v1035 = vmul.f32 %v1030, %v1034
    %v1036 = vsub.f32 %v1035, %v861
    %v1037 = vmul.f32 %v974, %v1036
    %v1038 = vadd.f32 %v861, %v1037
    %v1039 = vsub.f32 %v1033, %v864
    %v1040 = vmul.f32 %v974, %v1039
    %v1041 = vadd.f32 %v864, %v1040
    %v1042 = vpack.c.bf16 %v1038, %v1038
    %v1043 = vpack.c.bf16 %v969, %v969
    %1044 = vmatprep.subr.bf16.mxu0 0
    %1045 = vmatpush1.bf16.msra.mxu0 %v274
    %1046 = vmatprep.subr.bf16.mxu0 0
    %1047 = vmatpush1.bf16.msra.mxu0 %v275
    %1048 = vmatprep.subr.bf16.mxu0 0
    %1049 = vmatpush1.bf16.msra.mxu0 %v276
    %1050 = vmatprep.subr.bf16.mxu0 0
    %1051 = vmatpush1.bf16.msra.mxu0 %v277
    %1052 = vmatprep.subr.bf16.mxu0 0
    %1053 = vmatpush1.bf16.msra.mxu0 %v278
    %1054 = vmatprep.subr.bf16.mxu0 0
    %1055 = vmatpush1.bf16.msra.mxu0 %v279
    %1056 = vmatprep.subr.bf16.mxu0 0
    %1057 = vmatpush1.bf16.msra.mxu0 %v280
    %1058 = vmatprep.subr.bf16.mxu0 0
    %1059 = vmatpush1.bf16.msra.mxu0 %v281
    %1060 = vmatprep.subr.bf16.mxu0 0
    %1061 = vmatpush1.bf16.msra.mxu0 0
    %1062 = vmatprep.subr.bf16.mxu0 0
    %1063 = vmatpush1.bf16.msra.mxu0 0
    %1064 = vmatprep.subr.bf16.mxu0 0
    %1065 = vmatpush1.bf16.msra.mxu0 0
    %1066 = vmatprep.subr.bf16.mxu0 0
    %1067 = vmatpush1.bf16.msra.mxu0 0
    %1068 = vmatprep.subr.bf16.mxu0 0
    %1069 = vmatpush1.bf16.msra.mxu0 0
    %1070 = vmatprep.subr.bf16.mxu0 0
    %1071 = vmatpush1.bf16.msra.mxu0 0
    %1072 = vmatprep.subr.bf16.mxu0 0
    %1073 = vmatpush1.bf16.msra.mxu0 0
    %1074 = vmatprep.subr.bf16.mxu0 0
    %1075 = vmatpush1.bf16.msra.mxu0 0
    %1076 = vmatprep.mubr.bf16.mxu0 0
    %1077 = vmatmul.mubr.bf16.gmra.mrb[0].mxu0 %v1043
    %v1078 = vpop.f32.mrb[0].mxu0
    %v1079 = vadd.f32 0.0, %v1078
    %v1080 = vpop.f32.mrb[0].mxu0
    %v1081 = vpop.f32.mrb[0].mxu0
    %v1082 = vpop.f32.mrb[0].mxu0
    %1083 = vdwg.mxu0
    %1084 = vmatprep.subr.bf16.mxu0 0
    %1085 = vmatpush1.bf16.msra.mxu0 %v362
    %1086 = vmatprep.subr.bf16.mxu0 0
    %1087 = vmatpush1.bf16.msra.mxu0 %v363
    %1088 = vmatprep.subr.bf16.mxu0 0
    %1089 = vmatpush1.bf16.msra.mxu0 %v364
    %1090 = vmatprep.subr.bf16.mxu0 0
    %1091 = vmatpush1.bf16.msra.mxu0 %v365
    %1092 = vmatprep.subr.bf16.mxu0 0
    %1093 = vmatpush1.bf16.msra.mxu0 %v366
    %1094 = vmatprep.subr.bf16.mxu0 0
    %1095 = vmatpush1.bf16.msra.mxu0 %v367
    %1096 = vmatprep.subr.bf16.mxu0 0
    %1097 = vmatpush1.bf16.msra.mxu0 %v368
    %1098 = vmatprep.subr.bf16.mxu0 0
    %1099 = vmatpush1.bf16.msra.mxu0 %v369
    %1100 = vmatprep.subr.bf16.mxu0 0
    %1101 = vmatpush1.bf16.msra.mxu0 0
    %1102 = vmatprep.subr.bf16.mxu0 0
    %1103 = vmatpush1.bf16.msra.mxu0 0
    %1104 = vmatprep.subr.bf16.mxu0 0
    %1105 = vmatpush1.bf16.msra.mxu0 0
    %1106 = vmatprep.subr.bf16.mxu0 0
    %1107 = vmatpush1.bf16.msra.mxu0 0
    %1108 = vmatprep.subr.bf16.mxu0 0
    %1109 = vmatpush1.bf16.msra.mxu0 0
    %1110 = vmatprep.subr.bf16.mxu0 0
    %1111 = vmatpush1.bf16.msra.mxu0 0
    %1112 = vmatprep.subr.bf16.mxu0 0
    %1113 = vmatpush1.bf16.msra.mxu0 0
    %1114 = vmatprep.subr.bf16.mxu0 0
    %1115 = vmatpush1.bf16.msra.mxu0 0
    %1116 = vmatprep.mubr.bf16.mxu0 0
    %1117 = vmatmul.mubr.bf16.gmra.mrb[0].mxu0 %v1042
    %v1118 = vpop.f32.mrb[0].mxu0
    %v1119 = vadd.f32 %v1079, %v1118
    %v1120 = vpop.f32.mrb[0].mxu0
    %v1121 = vpop.f32.mrb[0].mxu0
    %v1122 = vpop.f32.mrb[0].mxu0
    %1123 = vdwg.mxu0
    %v1124 = vadd.f32 %v1119, %v58
    %v1125 = vxor.u32 %v1124, 2147483648
    %v1126 = vmul.f32 %v1125, 1.442695
    %v1127 = vpow.pop %v1126
    %v1128 = vadd.f32 %v1127, 1.0
    %v1129 = vrcp.pop %v1128
    %v1130 = vmul.f32 1.0, %v1129
    %v1131 = vmul.f32 %v1130, %v48
    %v1132 = vadd.f32 %v1131, %v53
    %1133 = vrot.lane.b32.xlu0 %v1132, 96
    %v1134 = vpop.permute.xlu0 %1133
    %1135 = vrot.lane.b32.xlu0 %v1132, 64
    %v1136 = vpop.permute.xlu0 %1135
    %1137 = vrot.lane.b32.xlu0 %v1132, 32
    %v1138 = vpop.permute.xlu0 %1137
    %v1139 = vmul.f32 %v1134, %v972
    %v1140 = vmul.f32 %v1132, %v1136
    %v1141 = vadd.f32 %v1139, %v1140
    %v1142 = vtanh.pop %v1141
    %v1143 = vmul.f32 %v1138, %v1142
    %v1144 = vsub.f32 %v1143, %v969
    %v1145 = vmul.f32 %v974, %v1144
    %v1146 = vadd.f32 %v969, %v1145
    %v1147 = vsub.f32 %v1141, %v972
    %v1148 = vmul.f32 %v974, %v1147
    %v1149 = vadd.f32 %v972, %v1148
    %s1150 = scalar_lea.vmem [#allocation2], 104
    %v1151 = vld [vmem:[%s1150] sm:$0xff]
    %s1152 = scalar_lea.vmem [#allocation2], 40
    %v1153 = vld [vmem:[%s1152] sm:$0xff]
    %1154 = vmatprep.subr.bf16.mxu0 0
    %1155 = vmatpush1.bf16.msra.mxu0 %v162
    %1156 = vmatprep.subr.bf16.mxu0 0
    %1157 = vmatpush1.bf16.msra.mxu0 %v163
    %1158 = vmatprep.subr.bf16.mxu0 0
    %1159 = vmatpush1.bf16.msra.mxu0 %v164
    %1160 = vmatprep.subr.bf16.mxu0 0
    %1161 = vmatpush1.bf16.msra.mxu0 %v165
    %1162 = vmatprep.subr.bf16.mxu0 0
    %1163 = vmatpush1.bf16.msra.mxu0 %v166
    %1164 = vmatprep.subr.bf16.mxu0 0
    %1165 = vmatpush1.bf16.msra.mxu0 %v167
    %1166 = vmatprep.subr.bf16.mxu0 0
    %1167 = vmatpush1.bf16.msra.mxu0 %v168
    %1168 = vmatprep.subr.bf16.mxu0 0
    %1169 = vmatpush1.bf16.msra.mxu0 %v169
    %1170 = vmatprep.subr.bf16.mxu0 0
    %1171 = vmatpush1.bf16.msra.mxu0 0
    %1172 = vmatprep.subr.bf16.mxu0 0
    %1173 = vmatpush1.bf16.msra.mxu0 0
    %1174 = vmatprep.subr.bf16.mxu0 0
    %1175 = vmatpush1.bf16.msra.mxu0 0
    %1176 = vmatprep.subr.bf16.mxu0 0
    %1177 = vmatpush1.bf16.msra.mxu0 0
    %1178 = vmatprep.subr.bf16.mxu0 0
    %1179 = vmatpush1.bf16.msra.mxu0 0
    %1180 = vmatprep.subr.bf16.mxu0 0
    %1181 = vmatpush1.bf16.msra.mxu0 0
    %1182 = vmatprep.subr.bf16.mxu0 0
    %1183 = vmatpush1.bf16.msra.mxu0 0
    %1184 = vmatprep.subr.bf16.mxu0 0
    %1185 = vmatpush1.bf16.msra.mxu0 0
    %1186 = vmatprep.mubr.bf16.mxu0 0
    %1187 = vmatmul.mubr.bf16.gmra.mrb[0].mxu0 %v1042
    %v1188 = vpop.f32.mrb[0].mxu0
    %v1189 = vadd.f32 %v1153, %v1188
    %v1190 = vpop.f32.mrb[0].mxu0
    %v1191 = vpop.f32.mrb[0].mxu0
    %v1192 = vpop.f32.mrb[0].mxu0
    %1193 = vdwg.mxu0
    %v1194 = vxor.u32 %v1189, 2147483648
    %v1195 = vmul.f32 %v1194, 1.442695
    %v1196 = vpow.pop %v1195
    %v1197 = vadd.f32 %v1196, 1.0
    %v1198 = vrcp.pop %v1197
    %v1199 = vmul.f32 1.0, %v1198
    %v1200 = vmul.f32 %v1199, %v48
    %v1201 = vadd.f32 %v1200, %v53
    %1202 = vrot.lane.b32.xlu0 %v1201, 96
    %v1203 = vpop.permute.xlu0 %1202
    %1204 = vrot.lane.b32.xlu0 %v1201, 64
    %v1205 = vpop.permute.xlu0 %1204
    %1206 = vrot.lane.b32.xlu0 %v1201, 32
    %v1207 = vpop.permute.xlu0 %1206
    %v1208 = vmul.f32 %v1203, %v1041
    %v1209 = vmul.f32 %v1201, %v1205
    %v1210 = vadd.f32 %v1208, %v1209
    %v1211 = vtanh.pop %v1210
    %v1212 = vmul.f32 %v1207, %v1211
    %v1213 = vsub.f32 %v1212, %v1038
    %v1214 = vmul.f32 %v1151, %v1213
    %v1215 = vadd.f32 %v1038, %v1214
    %v1216 = vsub.f32 %v1210, %v1041
    %v1217 = vmul.f32 %v1151, %v1216
    %v1218 = vadd.f32 %v1041, %v1217
    %v1219 = vpack.c.bf16 %v1215, %v1215
    %v1220 = vpack.c.bf16 %v1146, %v1146
    %1221 = vmatprep.subr.bf16.mxu0 0
    %1222 = vmatpush1.bf16.msra.mxu0 %v274
    %1223 = vmatprep.subr.bf16.mxu0 0
    %1224 = vmatpush1.bf16.msra.mxu0 %v275
    %1225 = vmatprep.subr.bf16.mxu0 0
    %1226 = vmatpush1.bf16.msra.mxu0 %v276
    %1227 = vmatprep.subr.bf16.mxu0 0
    %1228 = vmatpush1.bf16.msra.mxu0 %v277
    %1229 = vmatprep.subr.bf16.mxu0 0
    %1230 = vmatpush1.bf16.msra.mxu0 %v278
    %1231 = vmatprep.subr.bf16.mxu0 0
    %1232 = vmatpush1.bf16.msra.mxu0 %v279
    %1233 = vmatprep.subr.bf16.mxu0 0
    %1234 = vmatpush1.bf16.msra.mxu0 %v280
    %1235 = vmatprep.subr.bf16.mxu0 0
    %1236 = vmatpush1.bf16.msra.mxu0 %v281
    %1237 = vmatprep.subr.bf16.mxu0 0
    %1238 = vmatpush1.bf16.msra.mxu0 0
    %1239 = vmatprep.subr.bf16.mxu0 0
    %1240 = vmatpush1.bf16.msra.mxu0 0
    %1241 = vmatprep.subr.bf16.mxu0 0
    %1242 = vmatpush1.bf16.msra.mxu0 0
    %1243 = vmatprep.subr.bf16.mxu0 0
    %1244 = vmatpush1.bf16.msra.mxu0 0
    %1245 = vmatprep.subr.bf16.mxu0 0
    %1246 = vmatpush1.bf16.msra.mxu0 0
    %1247 = vmatprep.subr.bf16.mxu0 0
    %1248 = vmatpush1.bf16.msra.mxu0 0
    %1249 = vmatprep.subr.bf16.mxu0 0
    %1250 = vmatpush1.bf16.msra.mxu0 0
    %1251 = vmatprep.subr.bf16.mxu0 0
    %1252 = vmatpush1.bf16.msra.mxu0 0
    %1253 = vmatprep.mubr.bf16.mxu0 0
    %1254 = vmatmul.mubr.bf16.gmra.mrb[0].mxu0 %v1220
    %v1255 = vpop.f32.mrb[0].mxu0
    %v1256 = vadd.f32 0.0, %v1255
    %v1257 = vpop.f32.mrb[0].mxu0
    %v1258 = vpop.f32.mrb[0].mxu0
    %v1259 = vpop.f32.mrb[0].mxu0
    %1260 = vdwg.mxu0
    %1261 = vmatprep.subr.bf16.mxu0 0
    %1262 = vmatpush1.bf16.msra.mxu0 %v362
    %1263 = vmatprep.subr.bf16.mxu0 0
    %1264 = vmatpush1.bf16.msra.mxu0 %v363
    %1265 = vmatprep.subr.bf16.mxu0 0
    %1266 = vmatpush1.bf16.msra.mxu0 %v364
    %1267 = vmatprep.subr.bf16.mxu0 0
    %1268 = vmatpush1.bf16.msra.mxu0 %v365
    %1269 = vmatprep.subr.bf16.mxu0 0
    %1270 = vmatpush1.bf16.msra.mxu0 %v366
    %1271 = vmatprep.subr.bf16.mxu0 0
    %1272 = vmatpush1.bf16.msra.mxu0 %v367
    %1273 = vmatprep.subr.bf16.mxu0 0
    %1274 = vmatpush1.bf16.msra.mxu0 %v368
    %1275 = vmatprep.subr.bf16.mxu0 0
    %1276 = vmatpush1.bf16.msra.mxu0 %v369
    %1277 = vmatprep.subr.bf16.mxu0 0
    %1278 = vmatpush1.bf16.msra.mxu0 0
    %1279 = vmatprep.subr.bf16.mxu0 0
    %1280 = vmatpush1.bf16.msra.mxu0 0
    %1281 = vmatprep.subr.bf16.mxu0 0
    %1282 = vmatpush1.bf16.msra.mxu0 0
    %1283 = vmatprep.subr.bf16.mxu0 0
    %1284 = vmatpush1.bf16.msra.mxu0 0
    %1285 = vmatprep.subr.bf16.mxu0 0
    %1286 = vmatpush1.bf16.msra.mxu0 0
    %1287 = vmatprep.subr.bf16.mxu0 0
    %1288 = vmatpush1.bf16.msra.mxu0 0
    %1289 = vmatprep.subr.bf16.mxu0 0
    %1290 = vmatpush1.bf16.msra.mxu0 0
    %1291 = vmatprep.subr.bf16.mxu0 0
    %1292 = vmatpush1.bf16.msra.mxu0 0
    %1293 = vmatprep.mubr.bf16.mxu0 0
    %1294 = vmatmul.mubr.bf16.gmra.mrb[0].mxu0 %v1219
    %v1295 = vpop.f32.mrb[0].mxu0
    %v1296 = vadd.f32 %v1256, %v1295
    %v1297 = vpop.f32.mrb[0].mxu0
    %v1298 = vpop.f32.mrb[0].mxu0
    %v1299 = vpop.f32.mrb[0].mxu0
    %1300 = vdwg.mxu0
    %v1301 = vadd.f32 %v1296, %v58
    %v1302 = vxor.u32 %v1301, 2147483648
    %v1303 = vmul.f32 %v1302, 1.442695
    %v1304 = vpow.pop %v1303
    %v1305 = vadd.f32 %v1304, 1.0
    %v1306 = vrcp.pop %v1305
    %v1307 = vmul.f32 1.0, %v1306
    %v1308 = vmul.f32 %v1307, %v48
    %v1309 = vadd.f32 %v1308, %v53
    %1310 = vrot.lane.b32.xlu0 %v1309, 96
    %v1311 = vpop.permute.xlu0 %1310
    %1312 = vrot.lane.b32.xlu0 %v1309, 64
    %v1313 = vpop.permute.xlu0 %1312
    %1314 = vrot.lane.b32.xlu0 %v1309, 32
    %v1315 = vpop.permute.xlu0 %1314
    %v1316 = vmul.f32 %v1311, %v1149
    %v1317 = vmul.f32 %v1309, %v1313
    %v1318 = vadd.f32 %v1316, %v1317
    %v1319 = vtanh.pop %v1318
    %v1320 = vmul.f32 %v1315, %v1319
    %v1321 = vsub.f32 %v1320, %v1146
    %v1322 = vmul.f32 %v1151, %v1321
    %v1323 = vadd.f32 %v1146, %v1322
    %v1324 = vsub.f32 %v1318, %v1149
    %v1325 = vmul.f32 %v1151, %v1324
    %v1326 = vadd.f32 %v1149, %v1325
    %s1327 = scalar_lea.vmem [#allocation2], 112
    %v1328 = vld [vmem:[%s1327] sm:$0xff]
    %s1329 = scalar_lea.vmem [#allocation2], 48
    %v1330 = vld [vmem:[%s1329] sm:$0xff]
    %1331 = vmatprep.subr.bf16.mxu0 0
    %1332 = vmatpush1.bf16.msra.mxu0 %v162
    %1333 = vmatprep.subr.bf16.mxu0 0
    %1334 = vmatpush1.bf16.msra.mxu0 %v163
    %1335 = vmatprep.subr.bf16.mxu0 0
    %1336 = vmatpush1.bf16.msra.mxu0 %v164
    %1337 = vmatprep.subr.bf16.mxu0 0
    %1338 = vmatpush1.bf16.msra.mxu0 %v165
    %1339 = vmatprep.subr.bf16.mxu0 0
    %1340 = vmatpush1.bf16.msra.mxu0 %v166
    %1341 = vmatprep.subr.bf16.mxu0 0
    %1342 = vmatpush1.bf16.msra.mxu0 %v167
    %1343 = vmatprep.subr.bf16.mxu0 0
    %1344 = vmatpush1.bf16.msra.mxu0 %v168
    %1345 = vmatprep.subr.bf16.mxu0 0
    %1346 = vmatpush1.bf16.msra.mxu0 %v169
    %1347 = vmatprep.subr.bf16.mxu0 0
    %1348 = vmatpush1.bf16.msra.mxu0 0
    %1349 = vmatprep.subr.bf16.mxu0 0
    %1350 = vmatpush1.bf16.msra.mxu0 0
    %1351 = vmatprep.subr.bf16.mxu0 0
    %1352 = vmatpush1.bf16.msra.mxu0 0
    %1353 = vmatprep.subr.bf16.mxu0 0
    %1354 = vmatpush1.bf16.msra.mxu0 0
    %1355 = vmatprep.subr.bf16.mxu0 0
    %1356 = vmatpush1.bf16.msra.mxu0 0
    %1357 = vmatprep.subr.bf16.mxu0 0
    %1358 = vmatpush1.bf16.msra.mxu0 0
    %1359 = vmatprep.subr.bf16.mxu0 0
    %1360 = vmatpush1.bf16.msra.mxu0 0
    %1361 = vmatprep.subr.bf16.mxu0 0
    %1362 = vmatpush1.bf16.msra.mxu0 0
    %1363 = vmatprep.mubr.bf16.mxu0 0
    %1364 = vmatmul.mubr.bf16.gmra.mrb[0].mxu0 %v1219
    %v1365 = vpop.f32.mrb[0].mxu0
    %v1366 = vadd.f32 %v1330, %v1365
    %v1367 = vpop.f32.mrb[0].mxu0
    %v1368 = vpop.f32.mrb[0].mxu0
    %v1369 = vpop.f32.mrb[0].mxu0
    %1370 = vdwg.mxu0
    %v1371 = vxor.u32 %v1366, 2147483648
    %v1372 = vmul.f32 %v1371, 1.442695
    %v1373 = vpow.pop %v1372
    %v1374 = vadd.f32 %v1373, 1.0
    %v1375 = vrcp.pop %v1374
    %v1376 = vmul.f32 1.0, %v1375
    %v1377 = vmul.f32 %v1376, %v48
    %v1378 = vadd.f32 %v1377, %v53
    %1379 = vrot.lane.b32.xlu0 %v1378, 96
    %v1380 = vpop.permute.xlu0 %1379
    %1381 = vrot.lane.b32.xlu0 %v1378, 64
    %v1382 = vpop.permute.xlu0 %1381
    %1383 = vrot.lane.b32.xlu0 %v1378, 32
    %v1384 = vpop.permute.xlu0 %1383
    %v1385 = vmul.f32 %v1380, %v1218
    %v1386 = vmul.f32 %v1378, %v1382
    %v1387 = vadd.f32 %v1385, %v1386
    %v1388 = vtanh.pop %v1387
    %v1389 = vmul.f32 %v1384, %v1388
    %v1390 = vsub.f32 %v1389, %v1215
    %v1391 = vmul.f32 %v1328, %v1390
    %v1392 = vadd.f32 %v1215, %v1391
    %v1393 = vsub.f32 %v1387, %v1218
    %v1394 = vmul.f32 %v1328, %v1393
    %v1395 = vadd.f32 %v1218, %v1394
    %v1396 = vpack.c.bf16 %v1392, %v1392
    %v1397 = vpack.c.bf16 %v1323, %v1323
    %1398 = vmatprep.subr.bf16.mxu0 0
    %1399 = vmatpush1.bf16.msra.mxu0 %v274
    %1400 = vmatprep.subr.bf16.mxu0 0
    %1401 = vmatpush1.bf16.msra.mxu0 %v275
    %1402 = vmatprep.subr.bf16.mxu0 0
    %1403 = vmatpush1.bf16.msra.mxu0 %v276
    %1404 = vmatprep.subr.bf16.mxu0 0
    %1405 = vmatpush1.bf16.msra.mxu0 %v277
    %1406 = vmatprep.subr.bf16.mxu0 0
    %1407 = vmatpush1.bf16.msra.mxu0 %v278
    %1408 = vmatprep.subr.bf16.mxu0 0
    %1409 = vmatpush1.bf16.msra.mxu0 %v279
    %1410 = vmatprep.subr.bf16.mxu0 0
    %1411 = vmatpush1.bf16.msra.mxu0 %v280
    %1412 = vmatprep.subr.bf16.mxu0 0
    %1413 = vmatpush1.bf16.msra.mxu0 %v281
    %1414 = vmatprep.subr.bf16.mxu0 0
    %1415 = vmatpush1.bf16.msra.mxu0 0
    %1416 = vmatprep.subr.bf16.mxu0 0
    %1417 = vmatpush1.bf16.msra.mxu0 0
    %1418 = vmatprep.subr.bf16.mxu0 0
    %1419 = vmatpush1.bf16.msra.mxu0 0
    %1420 = vmatprep.subr.bf16.mxu0 0
    %1421 = vmatpush1.bf16.msra.mxu0 0
    %1422 = vmatprep.subr.bf16.mxu0 0
    %1423 = vmatpush1.bf16.msra.mxu0 0
    %1424 = vmatprep.subr.bf16.mxu0 0
    %1425 = vmatpush1.bf16.msra.mxu0 0
    %1426 = vmatprep.subr.bf16.mxu0 0
    %1427 = vmatpush1.bf16.msra.mxu0 0
    %1428 = vmatprep.subr.bf16.mxu0 0
    %1429 = vmatpush1.bf16.msra.mxu0 0
    %1430 = vmatprep.mubr.bf16.mxu0 0
    %1431 = vmatmul.mubr.bf16.gmra.mrb[0].mxu0 %v1397
    %v1432 = vpop.f32.mrb[0].mxu0
    %v1433 = vadd.f32 0.0, %v1432
    %v1434 = vpop.f32.mrb[0].mxu0
    %v1435 = vpop.f32.mrb[0].mxu0
    %v1436 = vpop.f32.mrb[0].mxu0
    %1437 = vdwg.mxu0
    %1438 = vmatprep.subr.bf16.mxu0 0
    %1439 = vmatpush1.bf16.msra.mxu0 %v362
    %1440 = vmatprep.subr.bf16.mxu0 0
    %1441 = vmatpush1.bf16.msra.mxu0 %v363
    %1442 = vmatprep.subr.bf16.mxu0 0
    %1443 = vmatpush1.bf16.msra.mxu0 %v364
    %1444 = vmatprep.subr.bf16.mxu0 0
    %1445 = vmatpush1.bf16.msra.mxu0 %v365
    %1446 = vmatprep.subr.bf16.mxu0 0
    %1447 = vmatpush1.bf16.msra.mxu0 %v366
    %1448 = vmatprep.subr.bf16.mxu0 0
    %1449 = vmatpush1.bf16.msra.mxu0 %v367
    %1450 = vmatprep.subr.bf16.mxu0 0
    %1451 = vmatpush1.bf16.msra.mxu0 %v368
    %1452 = vmatprep.subr.bf16.mxu0 0
    %1453 = vmatpush1.bf16.msra.mxu0 %v369
    %1454 = vmatprep.subr.bf16.mxu0 0
    %1455 = vmatpush1.bf16.msra.mxu0 0
    %1456 = vmatprep.subr.bf16.mxu0 0
    %1457 = vmatpush1.bf16.msra.mxu0 0
    %1458 = vmatprep.subr.bf16.mxu0 0
    %1459 = vmatpush1.bf16.msra.mxu0 0
    %1460 = vmatprep.subr.bf16.mxu0 0
    %1461 = vmatpush1.bf16.msra.mxu0 0
    %1462 = vmatprep.subr.bf16.mxu0 0
    %1463 = vmatpush1.bf16.msra.mxu0 0
    %1464 = vmatprep.subr.bf16.mxu0 0
    %1465 = vmatpush1.bf16.msra.mxu0 0
    %1466 = vmatprep.subr.bf16.mxu0 0
    %1467 = vmatpush1.bf16.msra.mxu0 0
    %1468 = vmatprep.subr.bf16.mxu0 0
    %1469 = vmatpush1.bf16.msra.mxu0 0
    %1470 = vmatprep.mubr.bf16.mxu0 0
    %1471 = vmatmul.mubr.bf16.gmra.mrb[0].mxu0 %v1396
    %v1472 = vpop.f32.mrb[0].mxu0
    %v1473 = vadd.f32 %v1433, %v1472
    %v1474 = vpop.f32.mrb[0].mxu0
    %v1475 = vpop.f32.mrb[0].mxu0
    %v1476 = vpop.f32.mrb[0].mxu0
    %1477 = vdwg.mxu0
    %v1478 = vadd.f32 %v1473, %v58
    %v1479 = vxor.u32 %v1478, 2147483648
    %v1480 = vmul.f32 %v1479, 1.442695
    %v1481 = vpow.pop %v1480
    %v1482 = vadd.f32 %v1481, 1.0
    %v1483 = vrcp.pop %v1482
    %v1484 = vmul.f32 1.0, %v1483
    %v1485 = vmul.f32 %v1484, %v48
    %v1486 = vadd.f32 %v1485, %v53
    %1487 = vrot.lane.b32.xlu0 %v1486, 96
    %v1488 = vpop.permute.xlu0 %1487
    %1489 = vrot.lane.b32.xlu0 %v1486, 64
    %v1490 = vpop.permute.xlu0 %1489
    %1491 = vrot.lane.b32.xlu0 %v1486, 32
    %v1492 = vpop.permute.xlu0 %1491
    %v1493 = vmul.f32 %v1488, %v1326
    %v1494 = vmul.f32 %v1486, %v1490
    %v1495 = vadd.f32 %v1493, %v1494
    %v1496 = vtanh.pop %v1495
    %v1497 = vmul.f32 %v1492, %v1496
    %v1498 = vsub.f32 %v1497, %v1323
    %v1499 = vmul.f32 %v1328, %v1498
    %v1500 = vadd.f32 %v1323, %v1499
    %v1501 = vsub.f32 %v1495, %v1326
    %v1502 = vmul.f32 %v1328, %v1501
    %v1503 = vadd.f32 %v1326, %v1502
    %s1504 = scalar_lea.vmem [#allocation2], 120
    %v1505 = vld [vmem:[%s1504] sm:$0xff]
    %s1506 = scalar_lea.vmem [#allocation2], 56
    %v1507 = vld [vmem:[%s1506] sm:$0xff]
    %1508 = vmatprep.subr.bf16.mxu0 0
    %1509 = vmatpush1.bf16.msra.mxu0 %v162
    %1510 = vmatprep.subr.bf16.mxu0 0
    %1511 = vmatpush1.bf16.msra.mxu0 %v163
    %1512 = vmatprep.subr.bf16.mxu0 0
    %1513 = vmatpush1.bf16.msra.mxu0 %v164
    %1514 = vmatprep.subr.bf16.mxu0 0
    %1515 = vmatpush1.bf16.msra.mxu0 %v165
    %1516 = vmatprep.subr.bf16.mxu0 0
    %1517 = vmatpush1.bf16.msra.mxu0 %v166
    %1518 = vmatprep.subr.bf16.mxu0 0
    %1519 = vmatpush1.bf16.msra.mxu0 %v167
    %1520 = vmatprep.subr.bf16.mxu0 0
    %1521 = vmatpush1.bf16.msra.mxu0 %v168
    %1522 = vmatprep.subr.bf16.mxu0 0
    %1523 = vmatpush1.bf16.msra.mxu0 %v169
    %1524 = vmatprep.subr.bf16.mxu0 0
    %1525 = vmatpush1.bf16.msra.mxu0 0
    %1526 = vmatprep.subr.bf16.mxu0 0
    %1527 = vmatpush1.bf16.msra.mxu0 0
    %1528 = vmatprep.subr.bf16.mxu0 0
    %1529 = vmatpush1.bf16.msra.mxu0 0
    %1530 = vmatprep.subr.bf16.mxu0 0
    %1531 = vmatpush1.bf16.msra.mxu0 0
    %1532 = vmatprep.subr.bf16.mxu0 0
    %1533 = vmatpush1.bf16.msra.mxu0 0
    %1534 = vmatprep.subr.bf16.mxu0 0
    %1535 = vmatpush1.bf16.msra.mxu0 0
    %1536 = vmatprep.subr.bf16.mxu0 0
    %1537 = vmatpush1.bf16.msra.mxu0 0
    %1538 = vmatprep.subr.bf16.mxu0 0
    %1539 = vmatpush1.bf16.msra.mxu0 0
    %1540 = vmatprep.mubr.bf16.mxu0 0
    %1541 = vmatmul.mubr.bf16.gmra.mrb[0].mxu0 %v1396
    %v1542 = vpop.f32.mrb[0].mxu0
    %v1543 = vadd.f32 %v1507, %v1542
    %v1544 = vpop.f32.mrb[0].mxu0
    %v1545 = vpop.f32.mrb[0].mxu0
    %v1546 = vpop.f32.mrb[0].mxu0
    %1547 = vdwg.mxu0
    %v1548 = vxor.u32 %v1543, 2147483648
    %v1549 = vmul.f32 %v1548, 1.442695
    %v1550 = vpow.pop %v1549
    %v1551 = vadd.f32 %v1550, 1.0
    %v1552 = vrcp.pop %v1551
    %v1553 = vmul.f32 1.0, %v1552
    %v1554 = vmul.f32 %v1553, %v48
    %v1555 = vadd.f32 %v1554, %v53
    %1556 = vrot.lane.b32.xlu0 %v1555, 96
    %v1557 = vpop.permute.xlu0 %1556
    %1558 = vrot.lane.b32.xlu0 %v1555, 64
    %v1559 = vpop.permute.xlu0 %1558
    %1560 = vrot.lane.b32.xlu0 %v1555, 32
    %v1561 = vpop.permute.xlu0 %1560
    %v1562 = vmul.f32 %v1557, %v1395
    %v1563 = vmul.f32 %v1555, %v1559
    %v1564 = vadd.f32 %v1562, %v1563
    %v1565 = vtanh.pop %v1564
    %v1566 = vmul.f32 %v1561, %v1565
    %v1567 = vsub.f32 %v1566, %v1392
    %v1568 = vmul.f32 %v1505, %v1567
    %v1569 = vadd.f32 %v1392, %v1568
    %v1570 = vpack.c.bf16 %v1569, %v1569
    %v1571 = vpack.c.bf16 %v1500, %v1500
    %1572 = vmatprep.subr.bf16.mxu0 0
    %1573 = vmatpush1.bf16.msra.mxu0 %v274
    %1574 = vmatprep.subr.bf16.mxu0 0
    %1575 = vmatpush1.bf16.msra.mxu0 %v275
    %1576 = vmatprep.subr.bf16.mxu0 0
    %1577 = vmatpush1.bf16.msra.mxu0 %v276
    %1578 = vmatprep.subr.bf16.mxu0 0
    %1579 = vmatpush1.bf16.msra.mxu0 %v277
    %1580 = vmatprep.subr.bf16.mxu0 0
    %1581 = vmatpush1.bf16.msra.mxu0 %v278
    %1582 = vmatprep.subr.bf16.mxu0 0
    %1583 = vmatpush1.bf16.msra.mxu0 %v279
    %1584 = vmatprep.subr.bf16.mxu0 0
    %1585 = vmatpush1.bf16.msra.mxu0 %v280
    %1586 = vmatprep.subr.bf16.mxu0 0
    %1587 = vmatpush1.bf16.msra.mxu0 %v281
    %1588 = vmatprep.subr.bf16.mxu0 0
    %1589 = vmatpush1.bf16.msra.mxu0 0
    %1590 = vmatprep.subr.bf16.mxu0 0
    %1591 = vmatpush1.bf16.msra.mxu0 0
    %1592 = vmatprep.subr.bf16.mxu0 0
    %1593 = vmatpush1.bf16.msra.mxu0 0
    %1594 = vmatprep.subr.bf16.mxu0 0
    %1595 = vmatpush1.bf16.msra.mxu0 0
    %1596 = vmatprep.subr.bf16.mxu0 0
    %1597 = vmatpush1.bf16.msra.mxu0 0
    %1598 = vmatprep.subr.bf16.mxu0 0
    %1599 = vmatpush1.bf16.msra.mxu0 0
    %1600 = vmatprep.subr.bf16.mxu0 0
    %1601 = vmatpush1.bf16.msra.mxu0 0
    %1602 = vmatprep.subr.bf16.mxu0 0
    %1603 = vmatpush1.bf16.msra.mxu0 0
    %1604 = vmatprep.mubr.bf16.mxu0 0
    %1605 = vmatmul.mubr.bf16.gmra.mrb[0].mxu0 %v1571
    %v1606 = vpop.f32.mrb[0].mxu0
    %v1607 = vadd.f32 0.0, %v1606
    %v1608 = vpop.f32.mrb[0].mxu0
    %v1609 = vpop.f32.mrb[0].mxu0
    %v1610 = vpop.f32.mrb[0].mxu0
    %1611 = vdwg.mxu0
    %1612 = vmatprep.subr.bf16.mxu0 0
    %1613 = vmatpush1.bf16.msra.mxu0 %v362
    %1614 = vmatprep.subr.bf16.mxu0 0
    %1615 = vmatpush1.bf16.msra.mxu0 %v363
    %1616 = vmatprep.subr.bf16.mxu0 0
    %1617 = vmatpush1.bf16.msra.mxu0 %v364
    %1618 = vmatprep.subr.bf16.mxu0 0
    %1619 = vmatpush1.bf16.msra.mxu0 %v365
    %1620 = vmatprep.subr.bf16.mxu0 0
    %1621 = vmatpush1.bf16.msra.mxu0 %v366
    %1622 = vmatprep.subr.bf16.mxu0 0
    %1623 = vmatpush1.bf16.msra.mxu0 %v367
    %1624 = vmatprep.subr.bf16.mxu0 0
    %1625 = vmatpush1.bf16.msra.mxu0 %v368
    %1626 = vmatprep.subr.bf16.mxu0 0
    %1627 = vmatpush1.bf16.msra.mxu0 %v369
    %1628 = vmatprep.subr.bf16.mxu0 0
    %1629 = vmatpush1.bf16.msra.mxu0 0
    %1630 = vmatprep.subr.bf16.mxu0 0
    %1631 = vmatpush1.bf16.msra.mxu0 0
    %1632 = vmatprep.subr.bf16.mxu0 0
    %1633 = vmatpush1.bf16.msra.mxu0 0
    %1634 = vmatprep.subr.bf16.mxu0 0
    %1635 = vmatpush1.bf16.msra.mxu0 0
    %1636 = vmatprep.subr.bf16.mxu0 0
    %1637 = vmatpush1.bf16.msra.mxu0 0
    %1638 = vmatprep.subr.bf16.mxu0 0
    %1639 = vmatpush1.bf16.msra.mxu0 0
    %1640 = vmatprep.subr.bf16.mxu0 0
    %1641 = vmatpush1.bf16.msra.mxu0 0
    %1642 = vmatprep.subr.bf16.mxu0 0
    %1643 = vmatpush1.bf16.msra.mxu0 0
    %1644 = vmatprep.mubr.bf16.mxu0 0
    %1645 = vmatmul.mubr.bf16.gmra.mrb[0].mxu0 %v1570
    %v1646 = vpop.f32.mrb[0].mxu0
    %v1647 = vadd.f32 %v1607, %v1646
    %v1648 = vpop.f32.mrb[0].mxu0
    %v1649 = vpop.f32.mrb[0].mxu0
    %v1650 = vpop.f32.mrb[0].mxu0
    %1651 = vdwg.mxu0
    %v1652 = vadd.f32 %v1647, %v58
    %v1653 = vxor.u32 %v1652, 2147483648
    %v1654 = vmul.f32 %v1653, 1.442695
    %v1655 = vpow.pop %v1654
    %v1656 = vadd.f32 %v1655, 1.0
    %v1657 = vrcp.pop %v1656
    %v1658 = vmul.f32 1.0, %v1657
    %v1659 = vmul.f32 %v1658, %v48
    %v1660 = vadd.f32 %v1659, %v53
    %1661 = vrot.lane.b32.xlu0 %v1660, 96
    %v1662 = vpop.permute.xlu0 %1661
    %1663 = vrot.lane.b32.xlu0 %v1660, 64
    %v1664 = vpop.permute.xlu0 %1663
    %1665 = vrot.lane.b32.xlu0 %v1660, 32
    %v1666 = vpop.permute.xlu0 %1665
    %v1667 = vmul.f32 %v1662, %v1503
    %v1668 = vmul.f32 %v1660, %v1664
    %v1669 = vadd.f32 %v1667, %v1668
    %v1670 = vtanh.pop %v1669
    %v1671 = vmul.f32 %v1666, %v1670
    %v1672 = vsub.f32 %v1671, %v1500
    %v1673 = vmul.f32 %v1505, %v1672
    %v1674 = vadd.f32 %v1500, %v1673
    %v1675 = vpack.c.bf16 %v1674, %v1674
    %v1676 = vlaneseq
    %v1677 = vshrl.u32 %v1676, 7
    %v1678 = vsub.s32 0, %v1677
    %v1679 = vrot.slane %v59, %v1678
    %v1696 = vunpack.c.l.b16 %v111
    %v1697 = vunpack.c.l.b16 %v112
    %v1698 = vunpack.c.l.b16 %v113
    %v1699 = vunpack.c.l.b16 %v114
    %v1700 = vunpack.c.l.b16 %v115
    %v1701 = vunpack.c.l.b16 %v116
    %v1702 = vunpack.c.l.b16 %v117
    %v1703 = vunpack.c.l.b16 %v118
    %v1704 = vunpack.c.l.b16 %v119
    %v1705 = vunpack.c.l.b16 %v120
    %v1706 = vunpack.c.l.b16 %v121
    %v1707 = vunpack.c.l.b16 %v122
    %v1708 = vunpack.c.l.b16 %v123
    %v1709 = vunpack.c.l.b16 %v124
    %v1710 = vunpack.c.l.b16 %v125
    %v1711 = vunpack.c.l.b16 %v126
    %v1712 = vpack.c.b16 %v1697, %v1696
    %v1713 = vpack.c.b16 %v1699, %v1698
    %v1714 = vpack.c.b16 %v1701, %v1700
    %v1715 = vpack.c.b16 %v1703, %v1702
    %v1716 = vpack.c.b16 %v1705, %v1704
    %v1717 = vpack.c.b16 %v1707, %v1706
    %v1718 = vpack.c.b16 %v1709, %v1708
    %v1719 = vpack.c.b16 %v1711, %v1710
    %1728 = vmatprep.subr.bf16.mxu0 0
    %1729 = vmatpush1.bf16.msra.mxu0 %v1712
    %1730 = vmatprep.subr.bf16.mxu0 0
    %1731 = vmatpush1.bf16.msra.mxu0 %v1713
    %1732 = vmatprep.subr.bf16.mxu0 0
    %1733 = vmatpush1.bf16.msra.mxu0 %v1714
    %1734 = vmatprep.subr.bf16.mxu0 0
    %1735 = vmatpush1.bf16.msra.mxu0 %v1715
    %1736 = vmatprep.subr.bf16.mxu0 0
    %1737 = vmatpush1.bf16.msra.mxu0 %v1716
    %1738 = vmatprep.subr.bf16.mxu0 0
    %1739 = vmatpush1.bf16.msra.mxu0 %v1717
    %1740 = vmatprep.subr.bf16.mxu0 0
    %1741 = vmatpush1.bf16.msra.mxu0 %v1718
    %1742 = vmatprep.subr.bf16.mxu0 0
    %1743 = vmatpush1.bf16.msra.mxu0 %v1719
    %1744 = vmatprep.subr.bf16.mxu0 0
    %1745 = vmatpush1.bf16.msra.mxu0 0
    %1746 = vmatprep.subr.bf16.mxu0 0
    %1747 = vmatpush1.bf16.msra.mxu0 0
    %1748 = vmatprep.subr.bf16.mxu0 0
    %1749 = vmatpush1.bf16.msra.mxu0 0
    %1750 = vmatprep.subr.bf16.mxu0 0
    %1751 = vmatpush1.bf16.msra.mxu0 0
    %1752 = vmatprep.subr.bf16.mxu0 0
    %1753 = vmatpush1.bf16.msra.mxu0 0
    %1754 = vmatprep.subr.bf16.mxu0 0
    %1755 = vmatpush1.bf16.msra.mxu0 0
    %1756 = vmatprep.subr.bf16.mxu0 0
    %1757 = vmatpush1.bf16.msra.mxu0 0
    %1758 = vmatprep.subr.bf16.mxu0 0
    %1759 = vmatpush1.bf16.msra.mxu0 0
    %1760 = vmatprep.mubr.bf16.mxu0 0
    %1761 = vmatmul.mubr.bf16.gmra.mrb[0].mxu0 %v1675
    %v1762 = vpop.f32.mrb[0].mxu0
    %v1763 = vadd.f32 %v1679, %v1762
    %v1764 = vpop.f32.mrb[0].mxu0
    %v1765 = vpop.f32.mrb[0].mxu0
    %v1766 = vpop.f32.mrb[0].mxu0
    %1767 = vdwg.mxu0
    %1768 = vst [vmem:[#allocation7] sm:$0xff] %v1763
    // Predicated region
    $region22: #{tpu_custom_call.1} parent=1 // pred_check
      _
    $region23: #{tpu_custom_call.1} parent=1 // pred_check_branch
      %1770 = sbr.rel (0) target = $region25
    $region24: #{tpu_custom_call.1} parent=1 // pred_region
      %s1772 = ssub.s32 128, 128
      %1773 = vsyncadd [#allocation4], %s1772
      %s1775 = sshll.u32 [#allocation7], 4
      %s1776 = int_to_ptr.vmem [resolvable:$true] %s1775
      %1778 = dma.vmem_to_hbm [thread:$0]  %s1776, 128, %s3, [#allocation4]
    $region25: #{tpu_custom_call.1} parent=1 // pred_fallthru
      _
    // Predicated region
    $region26: #{tpu_custom_call.1} parent=1 // pred_check
      _
    $region27: #{tpu_custom_call.1} parent=1 // pred_check_branch
      %1780 = sbr.rel (0) target = $region29
    $region28: #{tpu_custom_call.1} parent=1 // pred_region
      %1781 = dma.done [#allocation4], 128
    $region29: #{tpu_custom_call.1} parent=1 // pred_fallthru
      _
    %1782 = vsyncpa [#allocation3], 1
    %1783 = vsyncpa [#allocation6], 1
    %1784 = vsyncpa [#allocation4], 1

</llo_original>
